<compile_context>
chip_gen: v6e
topology: v6e:2x2x1
jax: 0.10.0
libtpu: 0.0.40
codegen_flags: <defaults>
</compile_context>

<pallas_src>
import functools

import jax
import jax.numpy as jnp
from jax import lax
from jax.experimental import pallas as pl
from jax.experimental.pallas import tpu as pltpu


def _vp_kernel(x_ref, mask_ref,
               w1_ref, b1_ref, g1_ref, be1_ref,
               w2_ref, b2_ref, g2_ref, be2_ref,
               wl_ref, bl_ref,
               o_ref, *, K, F, T_valid, eps=1e-5):
    """One batch element per grid step.

    x_ref    : (T, Din)     f32   (T = padded length, multiple of 128)
    mask_ref : (1, T)       f32   (>0 => masked -> output 0.0)
    w1_ref   : (Din, K*F)   bf16  conv1 weight, taps packed along lanes
    b1_ref   : (1, F)       f32
    g1/be1   : (1, F)       f32   layernorm1 gamma/beta
    w2_ref   : (F, K*F)     bf16  conv2 weight, taps packed along lanes
    b2_ref   : (1, F)       f32
    g2/be2   : (1, F)       f32   layernorm2 gamma/beta
    wl_ref   : (1, F)       bf16  final linear weight (row layout)
    bl_ref   : (1, 1)       f32
    o_ref    : (1, T)       f32   lane-dense output row
    """
    pad = (K - 1) // 2
    T = x_ref.shape[0]
    ti = lax.broadcasted_iota(jnp.int32, (T, 1), 0)   # frame index within the block

    def conv1d_same(h_bf16, wp_ref, b_ref):
        # One fused MXU matmul for all K taps, then per-tap lane-group slice +
        # sublane roll + wrap mask (XLU/VPU work, hidden under the MXU).
        prod = jnp.dot(h_bf16, wp_ref[...], preferred_element_type=jnp.float32)
        acc = jnp.zeros((T, F), jnp.float32)
        for k in range(K):                              # static unroll (K small)
            p = prod[:, k * F:(k + 1) * F]              # static lane-group slice
            sh = pad - k                                # static time shift for this tap
            if sh == 0:
                acc = acc + p
            else:
                rolled = pltpu.roll(p, shift=sh % T, axis=0)
                valid = (ti >= sh) if sh > 0 else (ti < T + sh)
                acc = acc + jnp.where(valid, rolled, 0.0)   # zero the wrapped rows
        return acc + b_ref[...]                         # (1, F) broadcasts over T

    def layer_norm(h, g_ref, be_ref):
        mu = jnp.mean(h, axis=-1, keepdims=True)
        var = jnp.mean((h - mu) ** 2, axis=-1, keepdims=True)
        return (h - mu) * lax.rsqrt(var + eps) * g_ref[...] + be_ref[...]

    # conv block 1 (bf16 matmul, f32 accumulation / elementwise)
    h = conv1d_same(x_ref[...].astype(jnp.bfloat16), w1_ref, b1_ref)
    h = jnp.maximum(h, 0.0)
    h = layer_norm(h, g1_ref, be1_ref)
    # (dropout_1: identity in eval mode)

    # Rows past the original (unpadded) sequence length must be zero so conv2's
    # implicit zero padding at t >= T_valid matches the reference semantics.
    if T_valid < T:
        h = jnp.where(ti < T_valid, h, 0.0)

    # conv block 2
    h = conv1d_same(h.astype(jnp.bfloat16), w2_ref, b2_ref)
    h = jnp.maximum(h, 0.0)
    h = layer_norm(h, g2_ref, be2_ref)
    # (dropout_2: identity in eval mode)

    # Linear(F, 1) produced directly as the lane-dense (1, T) row: contract the last
    # dims of (1, F) and (T, F) in bf16 — no f32 h.T materialization.
    out_row = lax.dot_general(
        wl_ref[...], h.astype(jnp.bfloat16),
        dimension_numbers=(((1,), (1,)), ((), ())),
        preferred_element_type=jnp.float32) + bl_ref[...]

    # masked_fill(mask, 0.0)
    o_ref[...] = jnp.where(mask_ref[...] > 0.0, 0.0, out_row).astype(o_ref.dtype)


def variance_predictor(x, mask, params, *, K):
    """x: (B, T, Din) f32, mask: (B, T) bool. Returns (B, T) f32."""
    B, T, Din = x.shape
    F = params["w1"].shape[2]

    # Pad T up to a lane multiple so the (1, T) output/mask rows are full-width and
    # every (T, .) block is (8,128)-tile aligned.
    T_pad = max(128, ((T + 127) // 128) * 128)
    if T_pad > T:
        x = jnp.pad(x, ((0, 0), (0, T_pad - T), (0, 0)))
        mask = jnp.pad(mask, ((0, 0), (0, T_pad - T)), constant_values=True)
    mask3 = mask.astype(jnp.float32).reshape(B, 1, T_pad)

    # Pack conv weights (tap, in, out) -> (in, K*out) so each layer is one MXU matmul;
    # all resident MXU operands in bf16 (x is cast inside the kernel).
    w1p = params["w1"].transpose(1, 0, 2).reshape(Din, K * F).astype(jnp.bfloat16)
    w2p = params["w2"].transpose(1, 0, 2).reshape(F, K * F).astype(jnp.bfloat16)
    wl_row = params["wl"].reshape(1, F).astype(jnp.bfloat16)

    kern = functools.partial(_vp_kernel, K=K, F=F, T_valid=T)
    const = lambda shape: pl.BlockSpec(shape, lambda b: tuple(0 for _ in shape))

    # Per-step working set: double-buffered x/mask/out tiles + resident weights + fused
    # conv product / shifted copies / LN temporaries.  Ask for ~2x that, capped at 48 MiB
    # (never the full 64 MiB of a v7x TensorCore).
    per_step = (2 * T_pad * Din * 4 + 4 * T_pad * 4
                + (Din + F) * K * F * 2 + 12 * F * 4
                + 2 * T_pad * K * F * 4 + 4 * T_pad * F * 4)
    vmem_bytes = int(min(max(2 * per_step, 8 * 1024 * 1024), 48 * 1024 * 1024))

    out = pl.pallas_call(
        kern,
        out_shape=jax.ShapeDtypeStruct((B, 1, T_pad), jnp.float32),
        grid_spec=pltpu.PrefetchScalarGridSpec(
            num_scalar_prefetch=0,
            grid=(B,),
            in_specs=[
                pl.BlockSpec((None, T_pad, Din), lambda b: (b, 0, 0)),  # x    -> (T, Din)
                pl.BlockSpec((None, 1, T_pad), lambda b: (b, 0, 0)),    # mask -> (1, T)
                const((Din, K * F)),                                    # w1 packed (bf16)
                const((1, F)),                                          # b1
                const((1, F)),                                          # gamma1
                const((1, F)),                                          # beta1
                const((F, K * F)),                                      # w2 packed (bf16)
                const((1, F)),                                          # b2
                const((1, F)),                                          # gamma2
                const((1, F)),                                          # beta2
                const((1, F)),                                          # w_linear (bf16 row)
                const((1, 1)),                                          # b_linear
            ],
            out_specs=pl.BlockSpec((None, 1, T_pad), lambda b: (b, 0, 0)),  # -> (1, T) row
        ),
        compiler_params=pltpu.CompilerParams(
            dimension_semantics=("parallel",),
            vmem_limit_bytes=vmem_bytes),
    )(x, mask3,
      w1p, params["b1"], params["g1"], params["be1"],
      w2p, params["b2"], params["g2"], params["be2"],
      wl_row, params["bl"])
    return out[:, 0, :T]


def variance_predictor_ref(x, mask, params, *, K, eps=1e-5):
    """Pure-JAX f32 reference mirroring the PyTorch forward."""
    pad = (K - 1) // 2

    def conv1d_same(h, w, b):
        hp = jnp.pad(h, ((0, 0), (pad, pad), (0, 0)))
        T = h.shape[1]
        acc = sum(jnp.einsum("btd,df->btf", hp[:, k:k + T, :], w[k]) for k in range(K))
        return acc + b[0]

    def layer_norm(h, g, be):
        mu = jnp.mean(h, axis=-1, keepdims=True)
        var = jnp.mean((h - mu) ** 2, axis=-1, keepdims=True)
        return (h - mu) / jnp.sqrt(var + eps) * g[0] + be[0]

    h = layer_norm(jnp.maximum(conv1d_same(x, params["w1"], params["b1"]), 0.0),
                   params["g1"], params["be1"])
    h = layer_norm(jnp.maximum(conv1d_same(h, params["w2"], params["b2"]), 0.0),
                   params["g2"], params["be2"])
    out = (h @ params["wl"] + params["bl"][0])[..., 0]
    return jnp.where(mask, 0.0, out)


if __name__ == "__main__":
    # model_config-equivalent hyperparameters (small, synthetic)
    encoder_hidden = 32      # transformer.encoder_hidden  (input_size)
    filter_size = 32         # variance_predictor.filter_size
    kernel_size = 3          # variance_predictor.kernel_size
    B, T = 2, 8

    key = jax.random.PRNGKey(0)
    keys = jax.random.split(key, 12)

    def xavier(k, shape, fan_in, fan_out, gain=1.0):
        limit = gain * jnp.sqrt(6.0 / (fan_in + fan_out))
        return jax.random.uniform(k, shape, jnp.float32, -limit, limit)

    Din, F, K = encoder_hidden, filter_size, kernel_size
    params = {
        # conv weights stored as (tap, in, out) — equivalent to PyTorch (out, in, k) transposed
        "w1": xavier(keys[0], (K, Din, F), Din * K, F * K),
        "b1": jax.random.normal(keys[1], (1, F), jnp.float32) * 0.01,
        "g1": 1.0 + 0.1 * jax.random.normal(keys[2], (1, F), jnp.float32),
        "be1": 0.1 * jax.random.normal(keys[3], (1, F), jnp.float32),
        "w2": xavier(keys[4], (K, F, F), F * K, F * K),
        "b2": jax.random.normal(keys[5], (1, F), jnp.float32) * 0.01,
        "g2": 1.0 + 0.1 * jax.random.normal(keys[6], (1, F), jnp.float32),
        "be2": 0.1 * jax.random.normal(keys[7], (1, F), jnp.float32),
        "wl": xavier(keys[8], (F, 1), F, 1),
        "bl": jax.random.normal(keys[9], (1, 1), jnp.float32) * 0.01,
    }

    x = jax.random.normal(keys[10], (B, T, Din), jnp.float32)
    lengths = jnp.array([T, T - 3], dtype=jnp.int32)
    mask = jnp.arange(T)[None, :] >= lengths[:, None]        # True => padded position

    out = variance_predictor(x, mask, params, K=K)
    out = jax.block_until_ready(out)

    ref = variance_predictor_ref(x, mask, params, K=K)
    assert out.shape == (B, T)
    # bf16 MXU matmuls vs. the f32 reference: allow bf16-level tolerance.
    assert jnp.allclose(out, ref, atol=5e-2, rtol=5e-2), (out, ref)
    # Masked positions must be exactly zero.
    assert bool(jnp.all(jnp.where(mask, out == 0.0, True)))

    print("KERNEL_OK")
</pallas_src>

<mosaic_0001>
module attributes {stable_mosaic.version = 11 : i64} {
  func.func @_vp_kernel(%arg0: i32, %arg1: memref<1x128x32xf32, #tpu.memory_space<vmem>>, %arg2: memref<1x1x128xf32, #tpu.memory_space<vmem>>, %arg3: memref<32x96xbf16, #tpu.memory_space<vmem>>, %arg4: memref<1x32xf32, #tpu.memory_space<vmem>>, %arg5: memref<1x32xf32, #tpu.memory_space<vmem>>, %arg6: memref<1x32xf32, #tpu.memory_space<vmem>>, %arg7: memref<32x96xbf16, #tpu.memory_space<vmem>>, %arg8: memref<1x32xf32, #tpu.memory_space<vmem>>, %arg9: memref<1x32xf32, #tpu.memory_space<vmem>>, %arg10: memref<1x32xf32, #tpu.memory_space<vmem>>, %arg11: memref<1x32xbf16, #tpu.memory_space<vmem>>, %arg12: memref<1x1xf32, #tpu.memory_space<vmem>>, %arg13: memref<1x1x128xf32, #tpu.memory_space<vmem>>) attributes {dimension_semantics = [#tpu.dimension_semantics<parallel>], iteration_bounds = array<i64: 2>, scalar_prefetch = 0 : i64, scratch_operands = 0 : i64, tpu.core_type = #tpu.core_type<tc>, window_params = [{transform_indices = @transform_0, window_bounds = array<i64: 1, 128, 32>}, {transform_indices = @transform_1, window_bounds = array<i64: 1, 1, 128>}, {pipeline_mode = #tpu.pipeline_mode<synchronous>, transform_indices = @transform_2, window_bounds = array<i64: 32, 96>}, {pipeline_mode = #tpu.pipeline_mode<synchronous>, transform_indices = @transform_3, window_bounds = array<i64: 1, 32>}, {pipeline_mode = #tpu.pipeline_mode<synchronous>, transform_indices = @transform_4, window_bounds = array<i64: 1, 32>}, {pipeline_mode = #tpu.pipeline_mode<synchronous>, transform_indices = @transform_5, window_bounds = array<i64: 1, 32>}, {pipeline_mode = #tpu.pipeline_mode<synchronous>, transform_indices = @transform_6, window_bounds = array<i64: 32, 96>}, {pipeline_mode = #tpu.pipeline_mode<synchronous>, transform_indices = @transform_7, window_bounds = array<i64: 1, 32>}, {pipeline_mode = #tpu.pipeline_mode<synchronous>, transform_indices = @transform_8, window_bounds = array<i64: 1, 32>}, {pipeline_mode = #tpu.pipeline_mode<synchronous>, transform_indices = @transform_9, window_bounds = array<i64: 1, 32>}, {pipeline_mode = #tpu.pipeline_mode<synchronous>, transform_indices = @transform_10, window_bounds = array<i64: 1, 32>}, {pipeline_mode = #tpu.pipeline_mode<synchronous>, transform_indices = @transform_11, window_bounds = array<i64: 1, 1>}, {transform_indices = @transform_12, window_bounds = array<i64: 1, 1, 128>}]} {
    %0 = tpu.iota {dimensions = array<i32: 0>} : vector<128x1xi32>
    %c0 = arith.constant 0 : index
    %c0_0 = arith.constant 0 : index
    %c0_1 = arith.constant 0 : index
    %1 = vector.load %arg1[%c0, %c0_0, %c0_1] : memref<1x128x32xf32, #tpu.memory_space<vmem>>, vector<1x128x32xf32>
    %2 = vector.shape_cast %1 : vector<1x128x32xf32> to vector<128x32xf32>
    %3 = arith.truncf %2 : vector<128x32xf32> to vector<128x32xbf16>
    %c0_2 = arith.constant 0 : index
    %c0_3 = arith.constant 0 : index
    %4 = vector.load %arg3[%c0_2, %c0_3] : memref<32x96xbf16, #tpu.memory_space<vmem>>, vector<32x96xbf16>
    %cst = arith.constant dense<0.000000e+00> : vector<128x96xf32>
    %5 = tpu.matmul %3, %4, %cst {dimension_numbers = #tpu.dot_dimension_numbers<[1], [0], [0], [1], [0, 0, 1, 1], [], []>} : vector<128x32xbf16>, vector<32x96xbf16>, vector<128x96xf32> -> vector<128x96xf32>
    %cst_4 = arith.constant 0.000000e+00 : f32
    %6 = vector.broadcast %cst_4 : f32 to vector<128x32xf32>
    %7 = vector.extract_strided_slice %5 {offsets = [0, 0], sizes = [128, 32], strides = [1, 1]} : vector<128x96xf32> to vector<128x32xf32>
    %c1_i32 = arith.constant 1 : i32
    %8 = tpu.dynamic_rotate %7 by %c1_i32 dim 0 : vector<128x32xf32>, i32 -> vector<128x32xf32>
    %c1_i32_5 = arith.constant 1 : i32
    %9 = vector.broadcast %c1_i32_5 : i32 to vector<128x1xi32>
    %10 = arith.cmpi sge, %0, %9 : vector<128x1xi32>
    %cst_6 = arith.constant 0.000000e+00 : f32
    %11 = vector.shape_cast %10 : vector<128x1xi1> to vector<128x1xi1>
    %12 = vector.broadcast %11 : vector<128x1xi1> to vector<128x32xi1>
    %13 = vector.broadcast %cst_6 : f32 to vector<128x32xf32>
    %14 = arith.select %12, %8, %13 : vector<128x32xi1>, vector<128x32xf32>
    %15 = arith.addf %6, %14 : vector<128x32xf32>
    %16 = vector.extract_strided_slice %5 {offsets = [0, 32], sizes = [128, 32], strides = [1, 1]} : vector<128x96xf32> to vector<128x32xf32>
    %17 = arith.addf %15, %16 : vector<128x32xf32>
    %18 = vector.extract_strided_slice %5 {offsets = [0, 64], sizes = [128, 32], strides = [1, 1]} : vector<128x96xf32> to vector<128x32xf32>
    %c127_i32 = arith.constant 127 : i32
    %19 = tpu.dynamic_rotate %18 by %c127_i32 dim 0 : vector<128x32xf32>, i32 -> vector<128x32xf32>
    %c127_i32_7 = arith.constant 127 : i32
    %20 = vector.broadcast %c127_i32_7 : i32 to vector<128x1xi32>
    %21 = arith.cmpi slt, %0, %20 : vector<128x1xi32>
    %cst_8 = arith.constant 0.000000e+00 : f32
    %22 = vector.shape_cast %21 : vector<128x1xi1> to vector<128x1xi1>
    %23 = vector.broadcast %22 : vector<128x1xi1> to vector<128x32xi1>
    %24 = vector.broadcast %cst_8 : f32 to vector<128x32xf32>
    %25 = arith.select %23, %19, %24 : vector<128x32xi1>, vector<128x32xf32>
    %26 = arith.addf %17, %25 : vector<128x32xf32>
    %c0_9 = arith.constant 0 : index
    %c0_10 = arith.constant 0 : index
    %27 = vector.load %arg4[%c0_9, %c0_10] : memref<1x32xf32, #tpu.memory_space<vmem>>, vector<1x32xf32>
    %28 = vector.broadcast %27 : vector<1x32xf32> to vector<128x32xf32>
    %29 = arith.addf %26, %28 : vector<128x32xf32>
    %cst_11 = arith.constant 0.000000e+00 : f32
    %30 = vector.broadcast %cst_11 : f32 to vector<128x32xf32>
    %31 = arith.maximumf %29, %30 : vector<128x32xf32>
    %cst_12 = arith.constant dense<0.000000e+00> : vector<128xf32>
    %32 = vector.multi_reduction <add>, %31, %cst_12 [1] : vector<128x32xf32> to vector<128xf32>
    %33 = vector.shape_cast %32 : vector<128xf32> to vector<128x1xf32>
    %cst_13 = arith.constant 3.200000e+01 : f32
    %34 = vector.broadcast %cst_13 : f32 to vector<128x1xf32>
    %35 = arith.divf %33, %34 : vector<128x1xf32>
    %36 = vector.broadcast %35 : vector<128x1xf32> to vector<128x32xf32>
    %37 = arith.subf %31, %36 : vector<128x32xf32>
    %38 = arith.mulf %37, %37 : vector<128x32xf32>
    %cst_14 = arith.constant dense<0.000000e+00> : vector<128xf32>
    %39 = vector.multi_reduction <add>, %38, %cst_14 [1] : vector<128x32xf32> to vector<128xf32>
    %40 = vector.shape_cast %39 : vector<128xf32> to vector<128x1xf32>
    %cst_15 = arith.constant 3.200000e+01 : f32
    %41 = vector.broadcast %cst_15 : f32 to vector<128x1xf32>
    %42 = arith.divf %40, %41 : vector<128x1xf32>
    %43 = vector.broadcast %35 : vector<128x1xf32> to vector<128x32xf32>
    %44 = arith.subf %31, %43 : vector<128x32xf32>
    %cst_16 = arith.constant 9.99999974E-6 : f32
    %45 = vector.broadcast %cst_16 : f32 to vector<128x1xf32>
    %46 = arith.addf %42, %45 : vector<128x1xf32>
    %47 = math.rsqrt %46 : vector<128x1xf32>
    %48 = vector.broadcast %47 : vector<128x1xf32> to vector<128x32xf32>
    %49 = arith.mulf %44, %48 : vector<128x32xf32>
    %c0_17 = arith.constant 0 : index
    %c0_18 = arith.constant 0 : index
    %50 = vector.load %arg5[%c0_17, %c0_18] : memref<1x32xf32, #tpu.memory_space<vmem>>, vector<1x32xf32>
    %51 = vector.broadcast %50 : vector<1x32xf32> to vector<128x32xf32>
    %52 = arith.mulf %49, %51 : vector<128x32xf32>
    %c0_19 = arith.constant 0 : index
    %c0_20 = arith.constant 0 : index
    %53 = vector.load %arg6[%c0_19, %c0_20] : memref<1x32xf32, #tpu.memory_space<vmem>>, vector<1x32xf32>
    %54 = vector.broadcast %53 : vector<1x32xf32> to vector<128x32xf32>
    %55 = arith.addf %52, %54 : vector<128x32xf32>
    %c8_i32 = arith.constant 8 : i32
    %56 = vector.broadcast %c8_i32 : i32 to vector<128x1xi32>
    %57 = arith.cmpi slt, %0, %56 : vector<128x1xi32>
    %cst_21 = arith.constant 0.000000e+00 : f32
    %58 = vector.shape_cast %57 : vector<128x1xi1> to vector<128x1xi1>
    %59 = vector.broadcast %58 : vector<128x1xi1> to vector<128x32xi1>
    %60 = vector.broadcast %cst_21 : f32 to vector<128x32xf32>
    %61 = arith.select %59, %55, %60 : vector<128x32xi1>, vector<128x32xf32>
    %62 = arith.truncf %61 : vector<128x32xf32> to vector<128x32xbf16>
    %c0_22 = arith.constant 0 : index
    %c0_23 = arith.constant 0 : index
    %63 = vector.load %arg7[%c0_22, %c0_23] : memref<32x96xbf16, #tpu.memory_space<vmem>>, vector<32x96xbf16>
    %cst_24 = arith.constant dense<0.000000e+00> : vector<128x96xf32>
    %64 = tpu.matmul %62, %63, %cst_24 {dimension_numbers = #tpu.dot_dimension_numbers<[1], [0], [0], [1], [0, 0, 1, 1], [], []>} : vector<128x32xbf16>, vector<32x96xbf16>, vector<128x96xf32> -> vector<128x96xf32>
    %cst_25 = arith.constant 0.000000e+00 : f32
    %65 = vector.broadcast %cst_25 : f32 to vector<128x32xf32>
    %66 = vector.extract_strided_slice %64 {offsets = [0, 0], sizes = [128, 32], strides = [1, 1]} : vector<128x96xf32> to vector<128x32xf32>
    %c1_i32_26 = arith.constant 1 : i32
    %67 = tpu.dynamic_rotate %66 by %c1_i32_26 dim 0 : vector<128x32xf32>, i32 -> vector<128x32xf32>
    %c1_i32_27 = arith.constant 1 : i32
    %68 = vector.broadcast %c1_i32_27 : i32 to vector<128x1xi32>
    %69 = arith.cmpi sge, %0, %68 : vector<128x1xi32>
    %cst_28 = arith.constant 0.000000e+00 : f32
    %70 = vector.shape_cast %69 : vector<128x1xi1> to vector<128x1xi1>
    %71 = vector.broadcast %70 : vector<128x1xi1> to vector<128x32xi1>
    %72 = vector.broadcast %cst_28 : f32 to vector<128x32xf32>
    %73 = arith.select %71, %67, %72 : vector<128x32xi1>, vector<128x32xf32>
    %74 = arith.addf %65, %73 : vector<128x32xf32>
    %75 = vector.extract_strided_slice %64 {offsets = [0, 32], sizes = [128, 32], strides = [1, 1]} : vector<128x96xf32> to vector<128x32xf32>
    %76 = arith.addf %74, %75 : vector<128x32xf32>
    %77 = vector.extract_strided_slice %64 {offsets = [0, 64], sizes = [128, 32], strides = [1, 1]} : vector<128x96xf32> to vector<128x32xf32>
    %c127_i32_29 = arith.constant 127 : i32
    %78 = tpu.dynamic_rotate %77 by %c127_i32_29 dim 0 : vector<128x32xf32>, i32 -> vector<128x32xf32>
    %c127_i32_30 = arith.constant 127 : i32
    %79 = vector.broadcast %c127_i32_30 : i32 to vector<128x1xi32>
    %80 = arith.cmpi slt, %0, %79 : vector<128x1xi32>
    %cst_31 = arith.constant 0.000000e+00 : f32
    %81 = vector.shape_cast %80 : vector<128x1xi1> to vector<128x1xi1>
    %82 = vector.broadcast %81 : vector<128x1xi1> to vector<128x32xi1>
    %83 = vector.broadcast %cst_31 : f32 to vector<128x32xf32>
    %84 = arith.select %82, %78, %83 : vector<128x32xi1>, vector<128x32xf32>
    %85 = arith.addf %76, %84 : vector<128x32xf32>
    %c0_32 = arith.constant 0 : index
    %c0_33 = arith.constant 0 : index
    %86 = vector.load %arg8[%c0_32, %c0_33] : memref<1x32xf32, #tpu.memory_space<vmem>>, vector<1x32xf32>
    %87 = vector.broadcast %86 : vector<1x32xf32> to vector<128x32xf32>
    %88 = arith.addf %85, %87 : vector<128x32xf32>
    %cst_34 = arith.constant 0.000000e+00 : f32
    %89 = vector.broadcast %cst_34 : f32 to vector<128x32xf32>
    %90 = arith.maximumf %88, %89 : vector<128x32xf32>
    %cst_35 = arith.constant dense<0.000000e+00> : vector<128xf32>
    %91 = vector.multi_reduction <add>, %90, %cst_35 [1] : vector<128x32xf32> to vector<128xf32>
    %92 = vector.shape_cast %91 : vector<128xf32> to vector<128x1xf32>
    %cst_36 = arith.constant 3.200000e+01 : f32
    %93 = vector.broadcast %cst_36 : f32 to vector<128x1xf32>
    %94 = arith.divf %92, %93 : vector<128x1xf32>
    %95 = vector.broadcast %94 : vector<128x1xf32> to vector<128x32xf32>
    %96 = arith.subf %90, %95 : vector<128x32xf32>
    %97 = arith.mulf %96, %96 : vector<128x32xf32>
    %cst_37 = arith.constant dense<0.000000e+00> : vector<128xf32>
    %98 = vector.multi_reduction <add>, %97, %cst_37 [1] : vector<128x32xf32> to vector<128xf32>
    %99 = vector.shape_cast %98 : vector<128xf32> to vector<128x1xf32>
    %cst_38 = arith.constant 3.200000e+01 : f32
    %100 = vector.broadcast %cst_38 : f32 to vector<128x1xf32>
    %101 = arith.divf %99, %100 : vector<128x1xf32>
    %102 = vector.broadcast %94 : vector<128x1xf32> to vector<128x32xf32>
    %103 = arith.subf %90, %102 : vector<128x32xf32>
    %cst_39 = arith.constant 9.99999974E-6 : f32
    %104 = vector.broadcast %cst_39 : f32 to vector<128x1xf32>
    %105 = arith.addf %101, %104 : vector<128x1xf32>
    %106 = math.rsqrt %105 : vector<128x1xf32>
    %107 = vector.broadcast %106 : vector<128x1xf32> to vector<128x32xf32>
    %108 = arith.mulf %103, %107 : vector<128x32xf32>
    %c0_40 = arith.constant 0 : index
    %c0_41 = arith.constant 0 : index
    %109 = vector.load %arg9[%c0_40, %c0_41] : memref<1x32xf32, #tpu.memory_space<vmem>>, vector<1x32xf32>
    %110 = vector.broadcast %109 : vector<1x32xf32> to vector<128x32xf32>
    %111 = arith.mulf %108, %110 : vector<128x32xf32>
    %c0_42 = arith.constant 0 : index
    %c0_43 = arith.constant 0 : index
    %112 = vector.load %arg10[%c0_42, %c0_43] : memref<1x32xf32, #tpu.memory_space<vmem>>, vector<1x32xf32>
    %113 = vector.broadcast %112 : vector<1x32xf32> to vector<128x32xf32>
    %114 = arith.addf %111, %113 : vector<128x32xf32>
    %c0_44 = arith.constant 0 : index
    %c0_45 = arith.constant 0 : index
    %115 = vector.load %arg11[%c0_44, %c0_45] : memref<1x32xbf16, #tpu.memory_space<vmem>>, vector<1x32xbf16>
    %116 = arith.truncf %114 : vector<128x32xf32> to vector<128x32xbf16>
    %cst_46 = arith.constant dense<0.000000e+00> : vector<1x128xf32>
    %117 = tpu.matmul %115, %116, %cst_46 {dimension_numbers = #tpu.dot_dimension_numbers<[1], [1], [0], [0], [0, 0, 1, 0], [], []>} : vector<1x32xbf16>, vector<128x32xbf16>, vector<1x128xf32> -> vector<1x128xf32>
    %c0_47 = arith.constant 0 : index
    %c0_48 = arith.constant 0 : index
    %118 = vector.load %arg12[%c0_47, %c0_48] : memref<1x1xf32, #tpu.memory_space<vmem>>, vector<1x1xf32>
    %119 = vector.broadcast %118 : vector<1x1xf32> to vector<1x128xf32>
    %120 = arith.addf %117, %119 : vector<1x128xf32>
    %c0_49 = arith.constant 0 : index
    %c0_50 = arith.constant 0 : index
    %c0_51 = arith.constant 0 : index
    %121 = vector.load %arg2[%c0_49, %c0_50, %c0_51] : memref<1x1x128xf32, #tpu.memory_space<vmem>>, vector<1x1x128xf32>
    %122 = vector.shape_cast %121 : vector<1x1x128xf32> to vector<1x128xf32>
    %cst_52 = arith.constant 0.000000e+00 : f32
    %123 = vector.broadcast %cst_52 : f32 to vector<1x128xf32>
    %124 = arith.cmpf ogt, %122, %123 : vector<1x128xf32>
    %cst_53 = arith.constant 0.000000e+00 : f32
    %125 = vector.broadcast %cst_53 : f32 to vector<1x128xf32>
    %126 = arith.select %124, %125, %120 : vector<1x128xi1>, vector<1x128xf32>
    %c0_54 = arith.constant 0 : index
    %c0_55 = arith.constant 0 : index
    %c0_56 = arith.constant 0 : index
    %127 = vector.load %arg13[%c0_54, %c0_55, %c0_56] : memref<1x1x128xf32, #tpu.memory_space<vmem>>, vector<1x1x128xf32>
    %128 = vector.shape_cast %127 : vector<1x1x128xf32> to vector<1x128xf32>
    %129 = vector.shape_cast %126 : vector<1x128xf32> to vector<1x1x128xf32>
    tpu.vector_store %arg13[%c0_54, %c0_55, %c0_56], %129 {strides = array<i32>} : memref<1x1x128xf32, #tpu.memory_space<vmem>>, vector<1x1x128xf32>,
    return
  }
  func.func @transform_0(%arg0: i32) -> (i32, i32, i32) {
    %c0_i32 = arith.constant 0 : i32
    %c0_i32_0 = arith.constant 0 : i32
    %c0_i32_1 = arith.constant 0 : i32
    return %arg0, %c0_i32, %c0_i32_0 : i32, i32, i32
  }
  func.func @transform_1(%arg0: i32) -> (i32, i32, i32) {
    %c0_i32 = arith.constant 0 : i32
    %c0_i32_0 = arith.constant 0 : i32
    %c0_i32_1 = arith.constant 0 : i32
    return %arg0, %c0_i32, %c0_i32_0 : i32, i32, i32
  }
  func.func @transform_2(%arg0: i32) -> (i32, i32) {
    %c0_i32 = arith.constant 0 : i32
    %c0_i32_0 = arith.constant 0 : i32
    %c0_i32_1 = arith.constant 0 : i32
    return %c0_i32, %c0_i32_0 : i32, i32
  }
  func.func @transform_3(%arg0: i32) -> (i32, i32) {
    %c0_i32 = arith.constant 0 : i32
    %c0_i32_0 = arith.constant 0 : i32
    %c0_i32_1 = arith.constant 0 : i32
    return %c0_i32, %c0_i32_0 : i32, i32
  }
  func.func @transform_4(%arg0: i32) -> (i32, i32) {
    %c0_i32 = arith.constant 0 : i32
    %c0_i32_0 = arith.constant 0 : i32
    %c0_i32_1 = arith.constant 0 : i32
    return %c0_i32, %c0_i32_0 : i32, i32
  }
  func.func @transform_5(%arg0: i32) -> (i32, i32) {
    %c0_i32 = arith.constant 0 : i32
    %c0_i32_0 = arith.constant 0 : i32
    %c0_i32_1 = arith.constant 0 : i32
    return %c0_i32, %c0_i32_0 : i32, i32
  }
  func.func @transform_6(%arg0: i32) -> (i32, i32) {
    %c0_i32 = arith.constant 0 : i32
    %c0_i32_0 = arith.constant 0 : i32
    %c0_i32_1 = arith.constant 0 : i32
    return %c0_i32, %c0_i32_0 : i32, i32
  }
  func.func @transform_7(%arg0: i32) -> (i32, i32) {
    %c0_i32 = arith.constant 0 : i32
    %c0_i32_0 = arith.constant 0 : i32
    %c0_i32_1 = arith.constant 0 : i32
    return %c0_i32, %c0_i32_0 : i32, i32
  }
  func.func @transform_8(%arg0: i32) -> (i32, i32) {
    %c0_i32 = arith.constant 0 : i32
    %c0_i32_0 = arith.constant 0 : i32
    %c0_i32_1 = arith.constant 0 : i32
    return %c0_i32, %c0_i32_0 : i32, i32
  }
  func.func @transform_9(%arg0: i32) -> (i32, i32) {
    %c0_i32 = arith.constant 0 : i32
    %c0_i32_0 = arith.constant 0 : i32
    %c0_i32_1 = arith.constant 0 : i32
    return %c0_i32, %c0_i32_0 : i32, i32
  }
  func.func @transform_10(%arg0: i32) -> (i32, i32) {
    %c0_i32 = arith.constant 0 : i32
    %c0_i32_0 = arith.constant 0 : i32
    %c0_i32_1 = arith.constant 0 : i32
    return %c0_i32, %c0_i32_0 : i32, i32
  }
  func.func @transform_11(%arg0: i32) -> (i32, i32) {
    %c0_i32 = arith.constant 0 : i32
    %c0_i32_0 = arith.constant 0 : i32
    %c0_i32_1 = arith.constant 0 : i32
    return %c0_i32, %c0_i32_0 : i32, i32
  }
  func.func @transform_12(%arg0: i32) -> (i32, i32, i32) {
    %c0_i32 = arith.constant 0 : i32
    %c0_i32_0 = arith.constant 0 : i32
    %c0_i32_1 = arith.constant 0 : i32
    return %arg0, %c0_i32, %c0_i32_0 : i32, i32, i32
  }
}

</mosaic_0001>

<llo_original>
// kernel: tpu_custom_call.1
$region0: #{tpu_custom_call.1}
  #allocation0 [shape = 'u32[]', space=smem, size = 0x4, offset = 0x4, fixed_abs, tag = 'smem constant byte address 0x4 - core index']
  #allocation1 [shape = 'u32[144,128]{1,0:T(1,128)}', space=vmem, size = 0x12000, scoped, tag = 'internal scratch']
  #allocation2 [shape = 'f32[1,1]{1,0:T(1,128)S(1)}', space=vmem, size = 0x200, scoped, tag = 'scoped memory for tpu_custom_call.1']
  %s0 = inlined_call_operand.vmem [shape: f32[2,128,32], index: 0, kind: input, shape index: {}]
  %s1 = inlined_call_operand.vmem [shape: f32[2,1,128], index: 1, kind: input, shape index: {}]
  %s2 = inlined_call_operand.vmem [shape: bf16[32,96], index: 2, kind: input, shape index: {}]
  %s3 = inlined_call_operand.vmem [shape: f32[1,32], index: 3, kind: input, shape index: {}]
  %s4 = inlined_call_operand.vmem [shape: f32[1,32], index: 4, kind: input, shape index: {}]
  %s5 = inlined_call_operand.vmem [shape: f32[1,32], index: 5, kind: input, shape index: {}]
  %s6 = inlined_call_operand.vmem [shape: bf16[32,96], index: 6, kind: input, shape index: {}]
  %s7 = inlined_call_operand.vmem [shape: f32[1,32], index: 7, kind: input, shape index: {}]
  %s8 = inlined_call_operand.vmem [shape: f32[1,32], index: 8, kind: input, shape index: {}]
  %s9 = inlined_call_operand.vmem [shape: f32[1,32], index: 9, kind: input, shape index: {}]
  %s10 = inlined_call_operand.vmem [shape: bf16[1,32], index: 10, kind: input, shape index: {}]
  %s11 = inlined_call_operand.<no memory space> [shape: f32[1,1], index: 11, kind: input, shape index: {}]
  %s12 = inlined_call_operand.hbm [shape: f32[2,1,128], index: 12, kind: output, shape index: {}]
  %s13 = sld [smem:[#allocation0]]
  $region81: #{tpu_custom_call.1} parent=0
    _
  %s15 = ssub.s32 1, %s13
  %s16 = scalar_select 0, %s15, %s13
  %v17 = vstv %s11
  %18 = vst [vmem:[#allocation2] sm:$0x1] %v17
  $region1: #{tpu_custom_call.1} parent=0
    #allocation3 [shape = 'u8[1024]{0}', space=vmem, size = 0x400, scoped, tag = 'output window, operand 0']
    #allocation4 [shape = 's32[2]{0}', space=sflag, size = 0x8, scoped, tag = 'scoped memory for tpu_custom_call.1']
    %19 = vsyncpa [#allocation4], 0
    %s20 = scalar_lea.sflag [#allocation4], 1
    %21 = vsyncpa %s20, 0
    loop: start=0, step=1, limit=4
    $region2: #{tpu_custom_call.1} parent=1 // loop_pre_header
      _
    $region3: #{tpu_custom_call.1} parent=1 // loop_header
      %s23 = sphi 0, %s27
      %p24 = scmp.ge.s32.totalorder %s23, 4
      %s33 = sphi 0, %s35
      %s36 = sphi 0, %s33
      %s37 = sphi 0, %s36
      %s53 = sphi 0, %s37
      %s59 = sphi 0, %s61
      %s62 = sphi 0, %s59
      %s63 = sphi 0, %s62
      %s79 = sphi 0, %s63
      %s83 = sphi 0, %s83
      %s85 = sphi 0, %s83
      %s86 = sphi 0, %s85
      %s100 = sphi 0, %s86
      %s104 = sphi 0, %s104
      %s106 = sphi 0, %s104
      %s107 = sphi 0, %s106
      %s121 = sphi 0, %s107
      %s125 = sphi 0, %s125
      %s127 = sphi 0, %s125
      %s128 = sphi 0, %s127
      %s142 = sphi 0, %s128
      %s146 = sphi 0, %s146
      %s148 = sphi 0, %s146
      %s149 = sphi 0, %s148
      %s163 = sphi 0, %s149
      %s167 = sphi 0, %s167
      %s169 = sphi 0, %s167
      %s170 = sphi 0, %s169
      %s184 = sphi 0, %s170
      %s188 = sphi 0, %s188
      %s190 = sphi 0, %s188
      %s191 = sphi 0, %s190
      %s205 = sphi 0, %s191
      %s209 = sphi 0, %s209
      %s211 = sphi 0, %s209
      %s212 = sphi 0, %s211
      %s226 = sphi 0, %s212
      %s230 = sphi 0, %s230
      %s232 = sphi 0, %s230
      %s233 = sphi 0, %s232
      %s247 = sphi 0, %s233
      %s251 = sphi 0, %s251
      %s253 = sphi 0, %s251
      %s254 = sphi 0, %s253
      %s268 = sphi 0, %s254
      %s272 = sphi 0, %s272
      %s274 = sphi 0, %s272
      %s275 = sphi 0, %s274
      %s289 = sphi 0, %s275
      %s295 = sphi 0, %s297
      %s298 = sphi 0, %s295
      %s299 = sphi 0, %s298
      %s315 = sphi 0, %s299
    $region4: #{tpu_custom_call.1} parent=1 // loop_header_branch
      %26 = sbr.rel (%p24) target = $region8
    $region5: #{tpu_custom_call.1} parent=1 // loop_body
      %s28 = ssub.s32 %s23, 1
      %s29 = ssub.s32 %s23, 2
      %s30 = sadd.s32 %s23, 1
      %s31 = ssub.s32 %s23, %s30
      %p32 = scmp.eq.s32.totalorder %s31, 0
      %s34 = sadd.s32 %s33, 1
      %s35 = scalar_select %p32, %s33, %s34
      %p38 = pneg %p32
      %p39 = scmp.eq.s32.totalorder %s23, 1
      %p40 = por %p38, %p39
      %p41 = scmp.ne.s32.totalorder %s33, %s36
      %p42 = scmp.eq.s32.totalorder %s23, 0
      %p43 = por %p41, %p42
      %p44 = scmp.ne.s32.totalorder %s33, %s36
      %p45 = scmp.eq.s32.totalorder %s28, 1
      %p46 = por %p44, %p45
      %p47 = scmp.ne.s32.totalorder %s36, %s37
      %p48 = scmp.eq.s32.totalorder %s28, 0
      %p49 = por %p47, %p48
      %p50 = scmp.ne.s32.totalorder %s36, %s37
      %p51 = scmp.eq.s32.totalorder %s29, 1
      %p52 = por %p50, %p51
      %p54 = scmp.ne.s32.totalorder %s37, %s53
      %p55 = scmp.eq.s32.totalorder %s29, 0
      %p56 = por %p54, %p55
      %s57 = ssub.s32 %s23, %s30
      %p58 = scmp.eq.s32.totalorder %s57, 0
      %s60 = sadd.s32 %s59, 1
      %s61 = scalar_select %p58, %s59, %s60
      %p64 = pneg %p58
      %p65 = scmp.eq.s32.totalorder %s23, 1
      %p66 = por %p64, %p65
      %p67 = scmp.ne.s32.totalorder %s59, %s62
      %p68 = scmp.eq.s32.totalorder %s23, 0
      %p69 = por %p67, %p68
      %p70 = scmp.ne.s32.totalorder %s59, %s62
      %p71 = scmp.eq.s32.totalorder %s28, 1
      %p72 = por %p70, %p71
      %p73 = scmp.ne.s32.totalorder %s62, %s63
      %p74 = scmp.eq.s32.totalorder %s28, 0
      %p75 = por %p73, %p74
      %p76 = scmp.ne.s32.totalorder %s62, %s63
      %p77 = scmp.eq.s32.totalorder %s29, 1
      %p78 = por %p76, %p77
      %p80 = scmp.ne.s32.totalorder %s63, %s79
      %p81 = scmp.eq.s32.totalorder %s29, 0
      %p82 = por %p80, %p81
      %s84 = sadd.s32 %s83, 1
      %p87 = scmp.eq.s32.totalorder %s23, 1
      %p88 = scmp.ne.s32.totalorder %s83, %s85
      %p89 = scmp.eq.s32.totalorder %s23, 0
      %p90 = por %p88, %p89
      %p91 = scmp.ne.s32.totalorder %s83, %s85
      %p92 = scmp.eq.s32.totalorder %s28, 1
      %p93 = por %p91, %p92
      %p94 = scmp.ne.s32.totalorder %s85, %s86
      %p95 = scmp.eq.s32.totalorder %s28, 0
      %p96 = por %p94, %p95
      %p97 = scmp.ne.s32.totalorder %s85, %s86
      %p98 = scmp.eq.s32.totalorder %s29, 1
      %p99 = por %p97, %p98
      %p101 = scmp.ne.s32.totalorder %s86, %s100
      %p102 = scmp.eq.s32.totalorder %s29, 0
      %p103 = por %p101, %p102
      %s105 = sadd.s32 %s104, 1
      %p108 = scmp.eq.s32.totalorder %s23, 1
      %p109 = scmp.ne.s32.totalorder %s104, %s106
      %p110 = scmp.eq.s32.totalorder %s23, 0
      %p111 = por %p109, %p110
      %p112 = scmp.ne.s32.totalorder %s104, %s106
      %p113 = scmp.eq.s32.totalorder %s28, 1
      %p114 = por %p112, %p113
      %p115 = scmp.ne.s32.totalorder %s106, %s107
      %p116 = scmp.eq.s32.totalorder %s28, 0
      %p117 = por %p115, %p116
      %p118 = scmp.ne.s32.totalorder %s106, %s107
      %p119 = scmp.eq.s32.totalorder %s29, 1
      %p120 = por %p118, %p119
      %p122 = scmp.ne.s32.totalorder %s107, %s121
      %p123 = scmp.eq.s32.totalorder %s29, 0
      %p124 = por %p122, %p123
      %s126 = sadd.s32 %s125, 1
      %p129 = scmp.eq.s32.totalorder %s23, 1
      %p130 = scmp.ne.s32.totalorder %s125, %s127
      %p131 = scmp.eq.s32.totalorder %s23, 0
      %p132 = por %p130, %p131
      %p133 = scmp.ne.s32.totalorder %s125, %s127
      %p134 = scmp.eq.s32.totalorder %s28, 1
      %p135 = por %p133, %p134
      %p136 = scmp.ne.s32.totalorder %s127, %s128
      %p137 = scmp.eq.s32.totalorder %s28, 0
      %p138 = por %p136, %p137
      %p139 = scmp.ne.s32.totalorder %s127, %s128
      %p140 = scmp.eq.s32.totalorder %s29, 1
      %p141 = por %p139, %p140
      %p143 = scmp.ne.s32.totalorder %s128, %s142
      %p144 = scmp.eq.s32.totalorder %s29, 0
      %p145 = por %p143, %p144
      %s147 = sadd.s32 %s146, 1
      %p150 = scmp.eq.s32.totalorder %s23, 1
      %p151 = scmp.ne.s32.totalorder %s146, %s148
      %p152 = scmp.eq.s32.totalorder %s23, 0
      %p153 = por %p151, %p152
      %p154 = scmp.ne.s32.totalorder %s146, %s148
      %p155 = scmp.eq.s32.totalorder %s28, 1
      %p156 = por %p154, %p155
      %p157 = scmp.ne.s32.totalorder %s148, %s149
      %p158 = scmp.eq.s32.totalorder %s28, 0
      %p159 = por %p157, %p158
      %p160 = scmp.ne.s32.totalorder %s148, %s149
      %p161 = scmp.eq.s32.totalorder %s29, 1
      %p162 = por %p160, %p161
      %p164 = scmp.ne.s32.totalorder %s149, %s163
      %p165 = scmp.eq.s32.totalorder %s29, 0
      %p166 = por %p164, %p165
      %s168 = sadd.s32 %s167, 1
      %p171 = scmp.eq.s32.totalorder %s23, 1
      %p172 = scmp.ne.s32.totalorder %s167, %s169
      %p173 = scmp.eq.s32.totalorder %s23, 0
      %p174 = por %p172, %p173
      %p175 = scmp.ne.s32.totalorder %s167, %s169
      %p176 = scmp.eq.s32.totalorder %s28, 1
      %p177 = por %p175, %p176
      %p178 = scmp.ne.s32.totalorder %s169, %s170
      %p179 = scmp.eq.s32.totalorder %s28, 0
      %p180 = por %p178, %p179
      %p181 = scmp.ne.s32.totalorder %s169, %s170
      %p182 = scmp.eq.s32.totalorder %s29, 1
      %p183 = por %p181, %p182
      %p185 = scmp.ne.s32.totalorder %s170, %s184
      %p186 = scmp.eq.s32.totalorder %s29, 0
      %p187 = por %p185, %p186
      %s189 = sadd.s32 %s188, 1
      %p192 = scmp.eq.s32.totalorder %s23, 1
      %p193 = scmp.ne.s32.totalorder %s188, %s190
      %p194 = scmp.eq.s32.totalorder %s23, 0
      %p195 = por %p193, %p194
      %p196 = scmp.ne.s32.totalorder %s188, %s190
      %p197 = scmp.eq.s32.totalorder %s28, 1
      %p198 = por %p196, %p197
      %p199 = scmp.ne.s32.totalorder %s190, %s191
      %p200 = scmp.eq.s32.totalorder %s28, 0
      %p201 = por %p199, %p200
      %p202 = scmp.ne.s32.totalorder %s190, %s191
      %p203 = scmp.eq.s32.totalorder %s29, 1
      %p204 = por %p202, %p203
      %p206 = scmp.ne.s32.totalorder %s191, %s205
      %p207 = scmp.eq.s32.totalorder %s29, 0
      %p208 = por %p206, %p207
      %s210 = sadd.s32 %s209, 1
      %p213 = scmp.eq.s32.totalorder %s23, 1
      %p214 = scmp.ne.s32.totalorder %s209, %s211
      %p215 = scmp.eq.s32.totalorder %s23, 0
      %p216 = por %p214, %p215
      %p217 = scmp.ne.s32.totalorder %s209, %s211
      %p218 = scmp.eq.s32.totalorder %s28, 1
      %p219 = por %p217, %p218
      %p220 = scmp.ne.s32.totalorder %s211, %s212
      %p221 = scmp.eq.s32.totalorder %s28, 0
      %p222 = por %p220, %p221
      %p223 = scmp.ne.s32.totalorder %s211, %s212
      %p224 = scmp.eq.s32.totalorder %s29, 1
      %p225 = por %p223, %p224
      %p227 = scmp.ne.s32.totalorder %s212, %s226
      %p228 = scmp.eq.s32.totalorder %s29, 0
      %p229 = por %p227, %p228
      %s231 = sadd.s32 %s230, 1
      %p234 = scmp.eq.s32.totalorder %s23, 1
      %p235 = scmp.ne.s32.totalorder %s230, %s232
      %p236 = scmp.eq.s32.totalorder %s23, 0
      %p237 = por %p235, %p236
      %p238 = scmp.ne.s32.totalorder %s230, %s232
      %p239 = scmp.eq.s32.totalorder %s28, 1
      %p240 = por %p238, %p239
      %p241 = scmp.ne.s32.totalorder %s232, %s233
      %p242 = scmp.eq.s32.totalorder %s28, 0
      %p243 = por %p241, %p242
      %p244 = scmp.ne.s32.totalorder %s232, %s233
      %p245 = scmp.eq.s32.totalorder %s29, 1
      %p246 = por %p244, %p245
      %p248 = scmp.ne.s32.totalorder %s233, %s247
      %p249 = scmp.eq.s32.totalorder %s29, 0
      %p250 = por %p248, %p249
      %s252 = sadd.s32 %s251, 1
      %p255 = scmp.eq.s32.totalorder %s23, 1
      %p256 = scmp.ne.s32.totalorder %s251, %s253
      %p257 = scmp.eq.s32.totalorder %s23, 0
      %p258 = por %p256, %p257
      %p259 = scmp.ne.s32.totalorder %s251, %s253
      %p260 = scmp.eq.s32.totalorder %s28, 1
      %p261 = por %p259, %p260
      %p262 = scmp.ne.s32.totalorder %s253, %s254
      %p263 = scmp.eq.s32.totalorder %s28, 0
      %p264 = por %p262, %p263
      %p265 = scmp.ne.s32.totalorder %s253, %s254
      %p266 = scmp.eq.s32.totalorder %s29, 1
      %p267 = por %p265, %p266
      %p269 = scmp.ne.s32.totalorder %s254, %s268
      %p270 = scmp.eq.s32.totalorder %s29, 0
      %p271 = por %p269, %p270
      %s273 = sadd.s32 %s272, 1
      %p276 = scmp.eq.s32.totalorder %s23, 1
      %p277 = scmp.ne.s32.totalorder %s272, %s274
      %p278 = scmp.eq.s32.totalorder %s23, 0
      %p279 = por %p277, %p278
      %p280 = scmp.ne.s32.totalorder %s272, %s274
      %p281 = scmp.eq.s32.totalorder %s28, 1
      %p282 = por %p280, %p281
      %p283 = scmp.ne.s32.totalorder %s274, %s275
      %p284 = scmp.eq.s32.totalorder %s28, 0
      %p285 = por %p283, %p284
      %p286 = scmp.ne.s32.totalorder %s274, %s275
      %p287 = scmp.eq.s32.totalorder %s29, 1
      %p288 = por %p286, %p287
      %p290 = scmp.ne.s32.totalorder %s275, %s289
      %p291 = scmp.eq.s32.totalorder %s29, 0
      %p292 = por %p290, %p291
      %s293 = ssub.s32 %s23, %s30
      %p294 = scmp.eq.s32.totalorder %s293, 0
      %s296 = sadd.s32 %s295, 1
      %s297 = scalar_select %p294, %s295, %s296
      %p300 = pneg %p294
      %p301 = scmp.eq.s32.totalorder %s23, 1
      %p302 = por %p300, %p301
      %p303 = scmp.ne.s32.totalorder %s295, %s298
      %p304 = scmp.eq.s32.totalorder %s23, 0
      %p305 = por %p303, %p304
      %p306 = scmp.ne.s32.totalorder %s295, %s298
      %p307 = scmp.eq.s32.totalorder %s28, 1
      %p308 = por %p306, %p307
      %p309 = scmp.ne.s32.totalorder %s298, %s299
      %p310 = scmp.eq.s32.totalorder %s28, 0
      %p311 = por %p309, %p310
      %p312 = scmp.ne.s32.totalorder %s298, %s299
      %p313 = scmp.eq.s32.totalorder %s29, 1
      %p314 = por %p312, %p313
      %p316 = scmp.ne.s32.totalorder %s299, %s315
      %p317 = scmp.eq.s32.totalorder %s29, 0
      %p318 = por %p316, %p317
      %p319 = scmp.le.s32.totalorder 1, %s23
      %p320 = scmp.lt.s32.totalorder %s23, 3
      %p321 = pnand %p319, %p320
      %p322 = pneg %p321
      // Predicated region
      $region9: #{tpu_custom_call.1} parent=5 // pred_check
        _
      $region10: #{tpu_custom_call.1} parent=5 // pred_check_branch
        %324 = sbr.rel (%p321) target = $region12
      $region11: #{tpu_custom_call.1} parent=5 // pred_region
        %s325 = ssub.s32 %s23, 1
        // Predicated region
        $region13: #{tpu_custom_call.1} parent=11 // pred_check
          %p326 = pneg %p96
        $region14: #{tpu_custom_call.1} parent=11 // pred_check_branch
          %328 = sbr.rel (%p326) target = $region16
        $region15: #{tpu_custom_call.1} parent=11 // pred_region
          _
        $region16: #{tpu_custom_call.1} parent=11 // pred_fallthru
          _
        // Predicated region
        $region17: #{tpu_custom_call.1} parent=11 // pred_check
          %p329 = pneg %p117
        $region18: #{tpu_custom_call.1} parent=11 // pred_check_branch
          %331 = sbr.rel (%p329) target = $region20
        $region19: #{tpu_custom_call.1} parent=11 // pred_region
          _
        $region20: #{tpu_custom_call.1} parent=11 // pred_fallthru
          _
        // Predicated region
        $region21: #{tpu_custom_call.1} parent=11 // pred_check
          %p332 = pneg %p138
        $region22: #{tpu_custom_call.1} parent=11 // pred_check_branch
          %334 = sbr.rel (%p332) target = $region24
        $region23: #{tpu_custom_call.1} parent=11 // pred_region
          _
        $region24: #{tpu_custom_call.1} parent=11 // pred_fallthru
          _
        // Predicated region
        $region25: #{tpu_custom_call.1} parent=11 // pred_check
          %p335 = pneg %p159
        $region26: #{tpu_custom_call.1} parent=11 // pred_check_branch
          %337 = sbr.rel (%p335) target = $region28
        $region27: #{tpu_custom_call.1} parent=11 // pred_region
          _
        $region28: #{tpu_custom_call.1} parent=11 // pred_fallthru
          _
        // Predicated region
        $region29: #{tpu_custom_call.1} parent=11 // pred_check
          %p338 = pneg %p180
        $region30: #{tpu_custom_call.1} parent=11 // pred_check_branch
          %340 = sbr.rel (%p338) target = $region32
        $region31: #{tpu_custom_call.1} parent=11 // pred_region
          _
        $region32: #{tpu_custom_call.1} parent=11 // pred_fallthru
          _
        // Predicated region
        $region33: #{tpu_custom_call.1} parent=11 // pred_check
          %p341 = pneg %p201
        $region34: #{tpu_custom_call.1} parent=11 // pred_check_branch
          %343 = sbr.rel (%p341) target = $region36
        $region35: #{tpu_custom_call.1} parent=11 // pred_region
          _
        $region36: #{tpu_custom_call.1} parent=11 // pred_fallthru
          _
        // Predicated region
        $region37: #{tpu_custom_call.1} parent=11 // pred_check
          %p344 = pneg %p222
        $region38: #{tpu_custom_call.1} parent=11 // pred_check_branch
          %346 = sbr.rel (%p344) target = $region40
        $region39: #{tpu_custom_call.1} parent=11 // pred_region
          _
        $region40: #{tpu_custom_call.1} parent=11 // pred_fallthru
          _
        // Predicated region
        $region41: #{tpu_custom_call.1} parent=11 // pred_check
          %p347 = pneg %p243
        $region42: #{tpu_custom_call.1} parent=11 // pred_check_branch
          %349 = sbr.rel (%p347) target = $region44
        $region43: #{tpu_custom_call.1} parent=11 // pred_region
          _
        $region44: #{tpu_custom_call.1} parent=11 // pred_fallthru
          _
        // Predicated region
        $region45: #{tpu_custom_call.1} parent=11 // pred_check
          %p350 = pneg %p264
        $region46: #{tpu_custom_call.1} parent=11 // pred_check_branch
          %352 = sbr.rel (%p350) target = $region48
        $region47: #{tpu_custom_call.1} parent=11 // pred_region
          _
        $region48: #{tpu_custom_call.1} parent=11 // pred_fallthru
          _
        // Predicated region
        $region49: #{tpu_custom_call.1} parent=11 // pred_check
          %p353 = pneg %p285
        $region50: #{tpu_custom_call.1} parent=11 // pred_check_branch
          %355 = sbr.rel (%p353) target = $region52
        $region51: #{tpu_custom_call.1} parent=11 // pred_region
          _
        $region52: #{tpu_custom_call.1} parent=11 // pred_fallthru
          _
      $region12: #{tpu_custom_call.1} parent=5 // pred_fallthru
        _
      %p356 = scmp.lt.s32.totalorder %s23, 2
      // Predicated region
      $region53: #{tpu_custom_call.1} parent=5 // pred_check
        %p357 = pneg %p356
      $region54: #{tpu_custom_call.1} parent=5 // pred_check_branch
        %359 = sbr.rel (%p357) target = $region56
      $region55: #{tpu_custom_call.1} parent=5 // pred_region
        // Predicated region
        $region57: #{tpu_custom_call.1} parent=55 // pred_check
          %p360 = pneg %p43
        $region58: #{tpu_custom_call.1} parent=55 // pred_check_branch
          %362 = sbr.rel (%p360) target = $region60
        $region59: #{tpu_custom_call.1} parent=55 // pred_region
          %p363 = scmp.lt.s32.totalorder %s23, 1
          %s364 = scalar_select %p363, %s23, 1
          %s365 = smul.addr %s364, 16
          %s366 = smul.addr %s365, 8
          %s367 = scalar_lea.vmem %s0, %s366
        $region60: #{tpu_custom_call.1} parent=55 // pred_fallthru
          _
        // Predicated region
        $region61: #{tpu_custom_call.1} parent=55 // pred_check
          %p368 = pneg %p69
        $region62: #{tpu_custom_call.1} parent=55 // pred_check_branch
          %370 = sbr.rel (%p368) target = $region64
        $region63: #{tpu_custom_call.1} parent=55 // pred_region
          %p371 = scmp.lt.s32.totalorder %s23, 1
          %s372 = scalar_select %p371, %s23, 1
          %s373 = scalar_lea.vmem %s1, %s372
        $region64: #{tpu_custom_call.1} parent=55 // pred_fallthru
          _
      $region56: #{tpu_custom_call.1} parent=5 // pred_fallthru
        _
      %p374 = scmp.le.s32.totalorder 1, %s23
      %p375 = scmp.lt.s32.totalorder %s23, 3
      %p376 = pnand %p374, %p375
      %p377 = pneg %p376
      // Predicated region
      $region65: #{tpu_custom_call.1} parent=5 // pred_check
        _
      $region66: #{tpu_custom_call.1} parent=5 // pred_check_branch
        %379 = sbr.rel (%p376) target = $region68
      $region67: #{tpu_custom_call.1} parent=5 // pred_region
        %s380 = ssub.s32 %s23, 1
        %p381 = scmp.lt.s32.totalorder %s28, 1
        %s382 = scalar_select %p381, %s28, 1
        %s383 = smul.addr %s382, 16
        %s384 = smul.addr %s383, 8
        %s385 = scalar_lea.vmem %s0, %s384
        %p386 = pneg %p49
        %p387 = pneg %p46
        %p388 = scmp.lt.s32.totalorder %s28, 1
        %s389 = scalar_select %p388, %s28, 1
        %s390 = scalar_lea.vmem %s1, %s389
        %p391 = pneg %p75
        %p392 = pneg %p72
        %p393 = pneg %p96
        %p394 = pneg %p93
        %p395 = pneg %p117
        %p396 = pneg %p114
        %p397 = pneg %p138
        %p398 = pneg %p135
        %p399 = pneg %p159
        %p400 = pneg %p156
        %p401 = pneg %p180
        %p402 = pneg %p177
        %p403 = pneg %p201
        %p404 = pneg %p198
        %p405 = pneg %p222
        %p406 = pneg %p219
        %p407 = pneg %p243
        %p408 = pneg %p240
        %p409 = pneg %p264
        %p410 = pneg %p261
        %p411 = pneg %p285
        %p412 = pneg %p282
        %p413 = pneg %p311
        %p414 = pneg %p308
        %s415 = sand.u32 %s298, 1
        %s416 = scalar_lea.sflag [#allocation4], %s415
        %s417 = sand.u32 %s298, 1
        %s418 = scalar_lea.vmem [#allocation3], %s417
        %p419 = scmp.lt.s32.totalorder %s28, 1
        %s420 = scalar_select %p419, %s28, 1
        %s421 = smul.addr %s420, 16
        %s422 = smul.addr %s421, 8
        %s423 = scalar_lea.vmem %s0, %s422
        %p424 = scmp.lt.s32.totalorder %s28, 1
        %s425 = scalar_select %p424, %s28, 1
        %s426 = scalar_lea.vmem %s1, %s425
        %v428 = vlaneseq
        %v429 = vshrl.u32 %v428, 7
        %v430 = vadd.s32 %v429, 8
        %v431 = vadd.s32 %v429, 16
        %v432 = vadd.s32 %v429, 24
        %v433 = vadd.s32 %v429, 32
        %v434 = vadd.s32 %v429, 40
        %v435 = vadd.s32 %v429, 48
        %v436 = vadd.s32 %v429, 56
        %v437 = vadd.s32 %v429, 64
        %v438 = vadd.s32 %v429, 72
        %v439 = vadd.s32 %v429, 80
        %v440 = vadd.s32 %v429, 88
        %v441 = vadd.s32 %v429, 96
        %v442 = vadd.s32 %v429, 104
        %v443 = vadd.s32 %v429, 112
        %v444 = vadd.s32 %v429, 120
        %v445 = vld [vmem:[%s423] sm:$0xff]
        %v446 = vld [vmem:[%s423 + $0x8] sm:$0xff]
        %v447 = vld [vmem:[%s423 + $0x10] sm:$0xff]
        %v448 = vld [vmem:[%s423 + $0x18] sm:$0xff]
        %v449 = vld [vmem:[%s423 + $0x20] sm:$0xff]
        %v450 = vld [vmem:[%s423 + $0x28] sm:$0xff]
        %v451 = vld [vmem:[%s423 + $0x30] sm:$0xff]
        %v452 = vld [vmem:[%s423 + $0x38] sm:$0xff]
        %v453 = vld [vmem:[%s423 + $0x40] sm:$0xff]
        %v454 = vld [vmem:[%s423 + $0x48] sm:$0xff]
        %v455 = vld [vmem:[%s423 + $0x50] sm:$0xff]
        %v456 = vld [vmem:[%s423 + $0x58] sm:$0xff]
        %v457 = vld [vmem:[%s423 + $0x60] sm:$0xff]
        %v458 = vld [vmem:[%s423 + $0x68] sm:$0xff]
        %v459 = vld [vmem:[%s423 + $0x70] sm:$0xff]
        %v460 = vld [vmem:[%s423 + $0x78] sm:$0xff]
        %v461 = vpack.c.bf16 %v446, %v445
        %v462 = vpack.c.bf16 %v448, %v447
        %v463 = vpack.c.bf16 %v450, %v449
        %v464 = vpack.c.bf16 %v452, %v451
        %v465 = vpack.c.bf16 %v454, %v453
        %v466 = vpack.c.bf16 %v456, %v455
        %v467 = vpack.c.bf16 %v458, %v457
        %v468 = vpack.c.bf16 %v460, %v459
        %v469 = vld [vmem:[%s2] sm:$0xf]
        %v470 = vld [vmem:[%s2 + $0x4] sm:$0xf]
        %v471 = vld [vmem:[%s2 + $0x8] sm:$0xf]
        %v472 = vld [vmem:[%s2 + $0xc] sm:$0xf]
        %v477 = vunpack.c.l.b16 %v469
        %v478 = vunpack.c.l.b16 %v470
        %v479 = vunpack.c.l.b16 %v471
        %v480 = vunpack.c.l.b16 %v472
        %v481 = vpack.c.b16 %v478, %v477
        %v482 = vpack.c.b16 %v480, %v479
        %vm485 = vcmask 261120
        %v487 = vsel %vm485, %v461, 0
        %v490 = vsel %vm485, %v462, 0
        %v493 = vsel %vm485, %v463, 0
        %v496 = vsel %vm485, %v464, 0
        %v499 = vsel %vm485, %v465, 0
        %v502 = vsel %vm485, %v466, 0
        %v505 = vsel %vm485, %v467, 0
        %v508 = vsel %vm485, %v468, 0
        %510 = vmatprep.subr.bf16.mxu0 0
        %511 = vmatpush1.bf16.msra.mxu0 0
        %512 = vmatprep.subr.bf16.mxu0 0
        %513 = vmatpush1.bf16.msra.mxu0 0
        %514 = vmatprep.subr.bf16.mxu0 0
        %515 = vmatpush1.bf16.msra.mxu0 0
        %516 = vmatprep.subr.bf16.mxu0 0
        %517 = vmatpush1.bf16.msra.mxu0 0
        %518 = vmatprep.subr.bf16.mxu0 0
        %519 = vmatpush1.bf16.msra.mxu0 0
        %520 = vmatprep.subr.bf16.mxu0 0
        %521 = vmatpush1.bf16.msra.mxu0 0
        %522 = vmatprep.subr.bf16.mxu0 0
        %523 = vmatpush1.bf16.msra.mxu0 %v482
        %524 = vmatprep.subr.bf16.mxu0 0
        %525 = vmatpush1.bf16.msra.mxu0 %v481
        %526 = vmatprep.subr.bf16.mxu0 0
        %527 = vmatpush2.bf16.msra.mxu0 0
        %528 = vmatprep.subr.bf16.mxu0 0
        %529 = vmatpush2.bf16.msra.mxu0 0
        %530 = vmatprep.subr.bf16.mxu0 0
        %531 = vmatpush2.bf16.msra.mxu0 0
        %532 = vmatprep.subr.bf16.mxu0 0
        %533 = vmatpush2.bf16.msra.mxu0 0
        %534 = vmatprep.subr.bf16.mxu0 0
        %535 = vmatpush2.bf16.msra.mxu0 0
        %536 = vmatprep.subr.bf16.mxu0 0
        %537 = vmatpush2.bf16.msra.mxu0 0
        %538 = vmatprep.subr.bf16.mxu0 0
        %539 = vmatpush2.bf16.msra.mxu0 0
        %540 = vmatprep.subr.bf16.mxu0 0
        %541 = vmatpush2.bf16.msra.mxu0 0
        %542 = vmatprep.mubr.bf16.mxu0 0
        %543 = vmatmul.mubr.bf16.gmra.mxu0 %v487
        %v544 = vpop.f32.mrf.mxu0
        %v545 = vadd.f32 0.0, %v544
        %v546 = vpop.f32.mrf.mxu0
        %v547 = vpop.f32.mrf.mxu0
        %v548 = vadd.f32 0.0, %v547
        %v549 = vpop.f32.mrf.mxu0
        %550 = vmatprep.mubr.bf16.mxu0 0
        %551 = vmatmul.mubr.bf16.gmra.mxu0 %v490
        %v552 = vpop.f32.mrf.mxu0
        %v553 = vadd.f32 0.0, %v552
        %v554 = vpop.f32.mrf.mxu0
        %v555 = vpop.f32.mrf.mxu0
        %v556 = vadd.f32 0.0, %v555
        %v557 = vpop.f32.mrf.mxu0
        %558 = vmatprep.mubr.bf16.mxu0 0
        %559 = vmatmul.mubr.bf16.gmra.mxu0 %v493
        %v560 = vpop.f32.mrf.mxu0
        %v561 = vadd.f32 0.0, %v560
        %v562 = vpop.f32.mrf.mxu0
        %v563 = vpop.f32.mrf.mxu0
        %v564 = vadd.f32 0.0, %v563
        %v565 = vpop.f32.mrf.mxu0
        %566 = vmatprep.mubr.bf16.mxu0 0
        %567 = vmatmul.mubr.bf16.gmra.mxu0 %v496
        %v568 = vpop.f32.mrf.mxu0
        %v569 = vadd.f32 0.0, %v568
        %v570 = vpop.f32.mrf.mxu0
        %v571 = vpop.f32.mrf.mxu0
        %v572 = vadd.f32 0.0, %v571
        %v573 = vpop.f32.mrf.mxu0
        %574 = vmatprep.mubr.bf16.mxu0 0
        %575 = vmatmul.mubr.bf16.gmra.mxu0 %v499
        %v576 = vpop.f32.mrf.mxu0
        %v577 = vadd.f32 0.0, %v576
        %v578 = vpop.f32.mrf.mxu0
        %v579 = vpop.f32.mrf.mxu0
        %v580 = vadd.f32 0.0, %v579
        %v581 = vpop.f32.mrf.mxu0
        %582 = vmatprep.mubr.bf16.mxu0 0
        %583 = vmatmul.mubr.bf16.gmra.mxu0 %v502
        %v584 = vpop.f32.mrf.mxu0
        %v585 = vadd.f32 0.0, %v584
        %v586 = vpop.f32.mrf.mxu0
        %v587 = vpop.f32.mrf.mxu0
        %v588 = vadd.f32 0.0, %v587
        %v589 = vpop.f32.mrf.mxu0
        %590 = vmatprep.mubr.bf16.mxu0 0
        %591 = vmatmul.mubr.bf16.gmra.mxu0 %v505
        %v592 = vpop.f32.mrf.mxu0
        %v593 = vadd.f32 0.0, %v592
        %v594 = vpop.f32.mrf.mxu0
        %v595 = vpop.f32.mrf.mxu0
        %v596 = vadd.f32 0.0, %v595
        %v597 = vpop.f32.mrf.mxu0
        %598 = vmatprep.mubr.bf16.mxu0 0
        %599 = vmatmul.mubr.bf16.gmra.mxu0 %v508
        %v600 = vpop.f32.mrf.mxu0
        %v601 = vadd.f32 0.0, %v600
        %v602 = vpop.f32.mrf.mxu0
        %v603 = vpop.f32.mrf.mxu0
        %v604 = vadd.f32 0.0, %v603
        %v605 = vpop.f32.mrf.mxu0
        %606 = vdwg.mxu0
        %v607 = vrot.slane %v545, 7
        %v608 = vrot.slane %v548, 7
        %v609 = vrot.slane %v553, 7
        %v610 = vrot.slane %v556, 7
        %v611 = vrot.slane %v561, 7
        %v612 = vrot.slane %v564, 7
        %v613 = vrot.slane %v569, 7
        %v614 = vrot.slane %v572, 7
        %v615 = vrot.slane %v577, 7
        %v616 = vrot.slane %v580, 7
        %v617 = vrot.slane %v585, 7
        %v618 = vrot.slane %v588, 7
        %v619 = vrot.slane %v593, 7
        %v620 = vrot.slane %v596, 7
        %v621 = vrot.slane %v601, 7
        %v622 = vrot.slane %v604, 7
        %vm623 = vcmp.lt.s32.totalorder %v429, 1
        %v624 = vsel %vm623, %v621, %v622
        %v625 = vsel %vm623, %v620, %v621
        %v626 = vsel %vm623, %v619, %v620
        %v627 = vsel %vm623, %v618, %v619
        %v628 = vsel %vm623, %v617, %v618
        %v629 = vsel %vm623, %v616, %v617
        %v630 = vsel %vm623, %v615, %v616
        %v631 = vsel %vm623, %v614, %v615
        %v632 = vsel %vm623, %v613, %v614
        %v633 = vsel %vm623, %v612, %v613
        %v634 = vsel %vm623, %v611, %v612
        %v635 = vsel %vm623, %v610, %v611
        %v636 = vsel %vm623, %v609, %v610
        %v637 = vsel %vm623, %v608, %v609
        %v638 = vsel %vm623, %v607, %v608
        %v639 = vsel %vm623, %v622, %v607
        %vm640 = vcmp.ge.s32.totalorder %v429, 1
        %vm641 = vcmp.ge.s32.totalorder %v430, 1
        %vm642 = vcmp.ge.s32.totalorder %v431, 1
        %vm643 = vcmp.ge.s32.totalorder %v432, 1
        %vm644 = vcmp.ge.s32.totalorder %v433, 1
        %vm645 = vcmp.ge.s32.totalorder %v434, 1
        %vm646 = vcmp.ge.s32.totalorder %v435, 1
        %vm647 = vcmp.ge.s32.totalorder %v436, 1
        %vm648 = vcmp.ge.s32.totalorder %v437, 1
        %vm649 = vcmp.ge.s32.totalorder %v438, 1
        %vm650 = vcmp.ge.s32.totalorder %v439, 1
        %vm651 = vcmp.ge.s32.totalorder %v440, 1
        %vm652 = vcmp.ge.s32.totalorder %v441, 1
        %vm653 = vcmp.ge.s32.totalorder %v442, 1
        %vm654 = vcmp.ge.s32.totalorder %v443, 1
        %vm655 = vcmp.ge.s32.totalorder %v444, 1
        %v656 = vsel %vm640, 1, 0
        %v657 = vsel %vm641, 1, 0
        %v658 = vsel %vm642, 1, 0
        %v659 = vsel %vm643, 1, 0
        %v660 = vsel %vm644, 1, 0
        %v661 = vsel %vm645, 1, 0
        %v662 = vsel %vm646, 1, 0
        %v663 = vsel %vm647, 1, 0
        %v664 = vsel %vm648, 1, 0
        %v665 = vsel %vm649, 1, 0
        %v666 = vsel %vm650, 1, 0
        %v667 = vsel %vm651, 1, 0
        %v668 = vsel %vm652, 1, 0
        %v669 = vsel %vm653, 1, 0
        %v670 = vsel %vm654, 1, 0
        %v671 = vsel %vm655, 1, 0
        %vm672 = vcmp.eq.s32.totalorder %v656, 1
        %vm673 = vcmp.eq.s32.totalorder %v657, 1
        %vm674 = vcmp.eq.s32.totalorder %v658, 1
        %vm675 = vcmp.eq.s32.totalorder %v659, 1
        %vm676 = vcmp.eq.s32.totalorder %v660, 1
        %vm677 = vcmp.eq.s32.totalorder %v661, 1
        %vm678 = vcmp.eq.s32.totalorder %v662, 1
        %vm679 = vcmp.eq.s32.totalorder %v663, 1
        %vm680 = vcmp.eq.s32.totalorder %v664, 1
        %vm681 = vcmp.eq.s32.totalorder %v665, 1
        %vm682 = vcmp.eq.s32.totalorder %v666, 1
        %vm683 = vcmp.eq.s32.totalorder %v667, 1
        %vm684 = vcmp.eq.s32.totalorder %v668, 1
        %vm685 = vcmp.eq.s32.totalorder %v669, 1
        %vm686 = vcmp.eq.s32.totalorder %v670, 1
        %vm687 = vcmp.eq.s32.totalorder %v671, 1
        %v688 = vsel %vm672, %v639, 0.0
        %v689 = vsel %vm673, %v638, 0.0
        %v690 = vsel %vm674, %v637, 0.0
        %v691 = vsel %vm675, %v636, 0.0
        %v692 = vsel %vm676, %v635, 0.0
        %v693 = vsel %vm677, %v634, 0.0
        %v694 = vsel %vm678, %v633, 0.0
        %v695 = vsel %vm679, %v632, 0.0
        %v696 = vsel %vm680, %v631, 0.0
        %v697 = vsel %vm681, %v630, 0.0
        %v698 = vsel %vm682, %v629, 0.0
        %v699 = vsel %vm683, %v628, 0.0
        %v700 = vsel %vm684, %v627, 0.0
        %v701 = vsel %vm685, %v626, 0.0
        %v702 = vsel %vm686, %v625, 0.0
        %v703 = vsel %vm687, %v624, 0.0
        %v704 = vadd.f32 %v688, 0.0
        %v705 = vadd.f32 %v689, 0.0
        %v706 = vadd.f32 %v690, 0.0
        %v707 = vadd.f32 %v691, 0.0
        %v708 = vadd.f32 %v692, 0.0
        %v709 = vadd.f32 %v693, 0.0
        %v710 = vadd.f32 %v694, 0.0
        %v711 = vadd.f32 %v695, 0.0
        %v712 = vadd.f32 %v696, 0.0
        %v713 = vadd.f32 %v697, 0.0
        %v714 = vadd.f32 %v698, 0.0
        %v715 = vadd.f32 %v699, 0.0
        %v716 = vadd.f32 %v700, 0.0
        %v717 = vadd.f32 %v701, 0.0
        %v718 = vadd.f32 %v702, 0.0
        %v719 = vadd.f32 %v703, 0.0
        %736 = vrot.lane.b32.xlu0 %v545, 96
        %v737 = vpop.permute.xlu0 %736
        %738 = vrot.lane.b32.xlu0 %v548, 96
        %v739 = vpop.permute.xlu0 %738
        %740 = vrot.lane.b32.xlu0 %v553, 96
        %v741 = vpop.permute.xlu0 %740
        %742 = vrot.lane.b32.xlu0 %v556, 96
        %v743 = vpop.permute.xlu0 %742
        %744 = vrot.lane.b32.xlu0 %v561, 96
        %v745 = vpop.permute.xlu0 %744
        %746 = vrot.lane.b32.xlu0 %v564, 96
        %v747 = vpop.permute.xlu0 %746
        %748 = vrot.lane.b32.xlu0 %v569, 96
        %v749 = vpop.permute.xlu0 %748
        %750 = vrot.lane.b32.xlu0 %v572, 96
        %v751 = vpop.permute.xlu0 %750
        %752 = vrot.lane.b32.xlu0 %v577, 96
        %v753 = vpop.permute.xlu0 %752
        %754 = vrot.lane.b32.xlu0 %v580, 96
        %v755 = vpop.permute.xlu0 %754
        %756 = vrot.lane.b32.xlu0 %v585, 96
        %v757 = vpop.permute.xlu0 %756
        %758 = vrot.lane.b32.xlu0 %v588, 96
        %v759 = vpop.permute.xlu0 %758
        %760 = vrot.lane.b32.xlu0 %v593, 96
        %v761 = vpop.permute.xlu0 %760
        %762 = vrot.lane.b32.xlu0 %v596, 96
        %v763 = vpop.permute.xlu0 %762
        %764 = vrot.lane.b32.xlu0 %v601, 96
        %v765 = vpop.permute.xlu0 %764
        %766 = vrot.lane.b32.xlu0 %v604, 96
        %v767 = vpop.permute.xlu0 %766
        %v784 = vadd.f32 %v704, %v737
        %v785 = vadd.f32 %v705, %v739
        %v786 = vadd.f32 %v706, %v741
        %v787 = vadd.f32 %v707, %v743
        %v788 = vadd.f32 %v708, %v745
        %v789 = vadd.f32 %v709, %v747
        %v790 = vadd.f32 %v710, %v749
        %v791 = vadd.f32 %v711, %v751
        %v792 = vadd.f32 %v712, %v753
        %v793 = vadd.f32 %v713, %v755
        %v794 = vadd.f32 %v714, %v757
        %v795 = vadd.f32 %v715, %v759
        %v796 = vadd.f32 %v716, %v761
        %v797 = vadd.f32 %v717, %v763
        %v798 = vadd.f32 %v718, %v765
        %v799 = vadd.f32 %v719, %v767
        %800 = vrot.lane.b32.xlu0 %v545, 64
        %v801 = vpop.permute.xlu0 %800
        %802 = vrot.lane.b32.xlu0 %v548, 64
        %v803 = vpop.permute.xlu0 %802
        %804 = vrot.lane.b32.xlu0 %v553, 64
        %v805 = vpop.permute.xlu0 %804
        %806 = vrot.lane.b32.xlu0 %v556, 64
        %v807 = vpop.permute.xlu0 %806
        %808 = vrot.lane.b32.xlu0 %v561, 64
        %v809 = vpop.permute.xlu0 %808
        %810 = vrot.lane.b32.xlu0 %v564, 64
        %v811 = vpop.permute.xlu0 %810
        %812 = vrot.lane.b32.xlu0 %v569, 64
        %v813 = vpop.permute.xlu0 %812
        %814 = vrot.lane.b32.xlu0 %v572, 64
        %v815 = vpop.permute.xlu0 %814
        %816 = vrot.lane.b32.xlu0 %v577, 64
        %v817 = vpop.permute.xlu0 %816
        %818 = vrot.lane.b32.xlu0 %v580, 64
        %v819 = vpop.permute.xlu0 %818
        %820 = vrot.lane.b32.xlu0 %v585, 64
        %v821 = vpop.permute.xlu0 %820
        %822 = vrot.lane.b32.xlu0 %v588, 64
        %v823 = vpop.permute.xlu0 %822
        %824 = vrot.lane.b32.xlu0 %v593, 64
        %v825 = vpop.permute.xlu0 %824
        %826 = vrot.lane.b32.xlu0 %v596, 64
        %v827 = vpop.permute.xlu0 %826
        %828 = vrot.lane.b32.xlu0 %v601, 64
        %v829 = vpop.permute.xlu0 %828
        %830 = vrot.lane.b32.xlu0 %v604, 64
        %v831 = vpop.permute.xlu0 %830
        %v848 = vrot.slane %v801, 1
        %v849 = vrot.slane %v803, 1
        %v850 = vrot.slane %v805, 1
        %v851 = vrot.slane %v807, 1
        %v852 = vrot.slane %v809, 1
        %v853 = vrot.slane %v811, 1
        %v854 = vrot.slane %v813, 1
        %v855 = vrot.slane %v815, 1
        %v856 = vrot.slane %v817, 1
        %v857 = vrot.slane %v819, 1
        %v858 = vrot.slane %v821, 1
        %v859 = vrot.slane %v823, 1
        %v860 = vrot.slane %v825, 1
        %v861 = vrot.slane %v827, 1
        %v862 = vrot.slane %v829, 1
        %v863 = vrot.slane %v831, 1
        %vm864 = vcmp.lt.s32.totalorder %v429, 7
        %v865 = vsel %vm864, %v862, %v863
        %v866 = vsel %vm864, %v861, %v862
        %v867 = vsel %vm864, %v860, %v861
        %v868 = vsel %vm864, %v859, %v860
        %v869 = vsel %vm864, %v858, %v859
        %v870 = vsel %vm864, %v857, %v858
        %v871 = vsel %vm864, %v856, %v857
        %v872 = vsel %vm864, %v855, %v856
        %v873 = vsel %vm864, %v854, %v855
        %v874 = vsel %vm864, %v853, %v854
        %v875 = vsel %vm864, %v852, %v853
        %v876 = vsel %vm864, %v851, %v852
        %v877 = vsel %vm864, %v850, %v851
        %v878 = vsel %vm864, %v849, %v850
        %v879 = vsel %vm864, %v848, %v849
        %v880 = vsel %vm864, %v863, %v848
        %vm881 = vcmp.lt.s32.totalorder %v429, 127
        %vm882 = vcmp.lt.s32.totalorder %v430, 127
        %vm883 = vcmp.lt.s32.totalorder %v431, 127
        %vm884 = vcmp.lt.s32.totalorder %v432, 127
        %vm885 = vcmp.lt.s32.totalorder %v433, 127
        %vm886 = vcmp.lt.s32.totalorder %v434, 127
        %vm887 = vcmp.lt.s32.totalorder %v435, 127
        %vm888 = vcmp.lt.s32.totalorder %v436, 127
        %vm889 = vcmp.lt.s32.totalorder %v437, 127
        %vm890 = vcmp.lt.s32.totalorder %v438, 127
        %vm891 = vcmp.lt.s32.totalorder %v439, 127
        %vm892 = vcmp.lt.s32.totalorder %v440, 127
        %vm893 = vcmp.lt.s32.totalorder %v441, 127
        %vm894 = vcmp.lt.s32.totalorder %v442, 127
        %vm895 = vcmp.lt.s32.totalorder %v443, 127
        %vm896 = vcmp.lt.s32.totalorder %v444, 127
        %v897 = vsel %vm881, 1, 0
        %v898 = vsel %vm882, 1, 0
        %v899 = vsel %vm883, 1, 0
        %v900 = vsel %vm884, 1, 0
        %v901 = vsel %vm885, 1, 0
        %v902 = vsel %vm886, 1, 0
        %v903 = vsel %vm887, 1, 0
        %v904 = vsel %vm888, 1, 0
        %v905 = vsel %vm889, 1, 0
        %v906 = vsel %vm890, 1, 0
        %v907 = vsel %vm891, 1, 0
        %v908 = vsel %vm892, 1, 0
        %v909 = vsel %vm893, 1, 0
        %v910 = vsel %vm894, 1, 0
        %v911 = vsel %vm895, 1, 0
        %v912 = vsel %vm896, 1, 0
        %vm913 = vcmp.eq.s32.totalorder %v897, 1
        %vm914 = vcmp.eq.s32.totalorder %v898, 1
        %vm915 = vcmp.eq.s32.totalorder %v899, 1
        %vm916 = vcmp.eq.s32.totalorder %v900, 1
        %vm917 = vcmp.eq.s32.totalorder %v901, 1
        %vm918 = vcmp.eq.s32.totalorder %v902, 1
        %vm919 = vcmp.eq.s32.totalorder %v903, 1
        %vm920 = vcmp.eq.s32.totalorder %v904, 1
        %vm921 = vcmp.eq.s32.totalorder %v905, 1
        %vm922 = vcmp.eq.s32.totalorder %v906, 1
        %vm923 = vcmp.eq.s32.totalorder %v907, 1
        %vm924 = vcmp.eq.s32.totalorder %v908, 1
        %vm925 = vcmp.eq.s32.totalorder %v909, 1
        %vm926 = vcmp.eq.s32.totalorder %v910, 1
        %vm927 = vcmp.eq.s32.totalorder %v911, 1
        %vm928 = vcmp.eq.s32.totalorder %v912, 1
        %v929 = vsel %vm913, %v879, 0.0
        %v930 = vsel %vm914, %v878, 0.0
        %v931 = vsel %vm915, %v877, 0.0
        %v932 = vsel %vm916, %v876, 0.0
        %v933 = vsel %vm917, %v875, 0.0
        %v934 = vsel %vm918, %v874, 0.0
        %v935 = vsel %vm919, %v873, 0.0
        %v936 = vsel %vm920, %v872, 0.0
        %v937 = vsel %vm921, %v871, 0.0
        %v938 = vsel %vm922, %v870, 0.0
        %v939 = vsel %vm923, %v869, 0.0
        %v940 = vsel %vm924, %v868, 0.0
        %v941 = vsel %vm925, %v867, 0.0
        %v942 = vsel %vm926, %v866, 0.0
        %v943 = vsel %vm927, %v865, 0.0
        %v944 = vsel %vm928, %v880, 0.0
        %v945 = vadd.f32 %v784, %v929
        %v946 = vadd.f32 %v785, %v930
        %v947 = vadd.f32 %v786, %v931
        %v948 = vadd.f32 %v787, %v932
        %v949 = vadd.f32 %v788, %v933
        %v950 = vadd.f32 %v789, %v934
        %v951 = vadd.f32 %v790, %v935
        %v952 = vadd.f32 %v791, %v936
        %v953 = vadd.f32 %v792, %v937
        %v954 = vadd.f32 %v793, %v938
        %v955 = vadd.f32 %v794, %v939
        %v956 = vadd.f32 %v795, %v940
        %v957 = vadd.f32 %v796, %v941
        %v958 = vadd.f32 %v797, %v942
        %v959 = vadd.f32 %v798, %v943
        %v960 = vadd.f32 %v799, %v944
        %v961 = vld [vmem:[%s3] sm:$0x1]
        %v963 = vlaneseq
        %v964 = vshrl.u32 %v963, 7
        %v965 = vsub.s32 0, %v964
        %v966 = vrot.slane %v961, %v965
        %v968 = vadd.f32 %v945, %v966
        %v969 = vadd.f32 %v946, %v966
        %v970 = vadd.f32 %v947, %v966
        %v971 = vadd.f32 %v948, %v966
        %v972 = vadd.f32 %v949, %v966
        %v973 = vadd.f32 %v950, %v966
        %v974 = vadd.f32 %v951, %v966
        %v975 = vadd.f32 %v952, %v966
        %v976 = vadd.f32 %v953, %v966
        %v977 = vadd.f32 %v954, %v966
        %v978 = vadd.f32 %v955, %v966
        %v979 = vadd.f32 %v956, %v966
        %v980 = vadd.f32 %v957, %v966
        %v981 = vadd.f32 %v958, %v966
        %v982 = vadd.f32 %v959, %v966
        %v983 = vadd.f32 %v960, %v966
        %v984 = vmax.f32 %v968, 0.0
        %v985 = vmax.f32 %v969, 0.0
        %v986 = vmax.f32 %v970, 0.0
        %v987 = vmax.f32 %v971, 0.0
        %v988 = vmax.f32 %v972, 0.0
        %v989 = vmax.f32 %v973, 0.0
        %v990 = vmax.f32 %v974, 0.0
        %v991 = vmax.f32 %v975, 0.0
        %v992 = vmax.f32 %v976, 0.0
        %v993 = vmax.f32 %v977, 0.0
        %v994 = vmax.f32 %v978, 0.0
        %v995 = vmax.f32 %v979, 0.0
        %v996 = vmax.f32 %v980, 0.0
        %v997 = vmax.f32 %v981, 0.0
        %v998 = vmax.f32 %v982, 0.0
        %v999 = vmax.f32 %v983, 0.0
        %v1000 = vsel %vm485, %v984, 0.0
        %1001 = vadd.xlane.f32.xlu0 %v1000
        %v1002 = vpop.xlane.xlu0 %1001
        %v1003 = vsel %vm485, %v985, 0.0
        %1004 = vadd.xlane.f32.xlu0 %v1003
        %v1005 = vpop.xlane.xlu0 %1004
        %v1006 = vsel %vm485, %v986, 0.0
        %1007 = vadd.xlane.f32.xlu0 %v1006
        %v1008 = vpop.xlane.xlu0 %1007
        %v1009 = vsel %vm485, %v987, 0.0
        %1010 = vadd.xlane.f32.xlu0 %v1009
        %v1011 = vpop.xlane.xlu0 %1010
        %v1012 = vsel %vm485, %v988, 0.0
        %1013 = vadd.xlane.f32.xlu0 %v1012
        %v1014 = vpop.xlane.xlu0 %1013
        %v1015 = vsel %vm485, %v989, 0.0
        %1016 = vadd.xlane.f32.xlu0 %v1015
        %v1017 = vpop.xlane.xlu0 %1016
        %v1018 = vsel %vm485, %v990, 0.0
        %1019 = vadd.xlane.f32.xlu0 %v1018
        %v1020 = vpop.xlane.xlu0 %1019
        %v1021 = vsel %vm485, %v991, 0.0
        %1022 = vadd.xlane.f32.xlu0 %v1021
        %v1023 = vpop.xlane.xlu0 %1022
        %v1024 = vsel %vm485, %v992, 0.0
        %1025 = vadd.xlane.f32.xlu0 %v1024
        %v1026 = vpop.xlane.xlu0 %1025
        %v1027 = vsel %vm485, %v993, 0.0
        %1028 = vadd.xlane.f32.xlu0 %v1027
        %v1029 = vpop.xlane.xlu0 %1028
        %v1030 = vsel %vm485, %v994, 0.0
        %1031 = vadd.xlane.f32.xlu0 %v1030
        %v1032 = vpop.xlane.xlu0 %1031
        %v1033 = vsel %vm485, %v995, 0.0
        %1034 = vadd.xlane.f32.xlu0 %v1033
        %v1035 = vpop.xlane.xlu0 %1034
        %v1036 = vsel %vm485, %v996, 0.0
        %1037 = vadd.xlane.f32.xlu0 %v1036
        %v1038 = vpop.xlane.xlu0 %1037
        %v1039 = vsel %vm485, %v997, 0.0
        %1040 = vadd.xlane.f32.xlu0 %v1039
        %v1041 = vpop.xlane.xlu0 %1040
        %v1042 = vsel %vm485, %v998, 0.0
        %1043 = vadd.xlane.f32.xlu0 %v1042
        %v1044 = vpop.xlane.xlu0 %1043
        %v1045 = vsel %vm485, %v999, 0.0
        %1046 = vadd.xlane.f32.xlu0 %v1045
        %v1047 = vpop.xlane.xlu0 %1046
        %v1048 = vrcp.pop 32.0
        %v1049 = vmul.f32 %v1002, %v1048
        %v1050 = vmul.f32 %v1005, %v1048
        %v1051 = vmul.f32 %v1008, %v1048
        %v1052 = vmul.f32 %v1011, %v1048
        %v1053 = vmul.f32 %v1014, %v1048
        %v1054 = vmul.f32 %v1017, %v1048
        %v1055 = vmul.f32 %v1020, %v1048
        %v1056 = vmul.f32 %v1023, %v1048
        %v1057 = vmul.f32 %v1026, %v1048
        %v1058 = vmul.f32 %v1029, %v1048
        %v1059 = vmul.f32 %v1032, %v1048
        %v1060 = vmul.f32 %v1035, %v1048
        %v1061 = vmul.f32 %v1038, %v1048
        %v1062 = vmul.f32 %v1041, %v1048
        %v1063 = vmul.f32 %v1044, %v1048
        %v1064 = vmul.f32 %v1047, %v1048
        %v1065 = vsub.f32 %v984, %v1049
        %v1066 = vsub.f32 %v985, %v1050
        %v1067 = vsub.f32 %v986, %v1051
        %v1068 = vsub.f32 %v987, %v1052
        %v1069 = vsub.f32 %v988, %v1053
        %v1070 = vsub.f32 %v989, %v1054
        %v1071 = vsub.f32 %v990, %v1055
        %v1072 = vsub.f32 %v991, %v1056
        %v1073 = vsub.f32 %v992, %v1057
        %v1074 = vsub.f32 %v993, %v1058
        %v1075 = vsub.f32 %v994, %v1059
        %v1076 = vsub.f32 %v995, %v1060
        %v1077 = vsub.f32 %v996, %v1061
        %v1078 = vsub.f32 %v997, %v1062
        %v1079 = vsub.f32 %v998, %v1063
        %v1080 = vsub.f32 %v999, %v1064
        %v1081 = vmul.f32 %v1065, %v1065
        %v1082 = vmul.f32 %v1066, %v1066
        %v1083 = vmul.f32 %v1067, %v1067
        %v1084 = vmul.f32 %v1068, %v1068
        %v1085 = vmul.f32 %v1069, %v1069
        %v1086 = vmul.f32 %v1070, %v1070
        %v1087 = vmul.f32 %v1071, %v1071
        %v1088 = vmul.f32 %v1072, %v1072
        %v1089 = vmul.f32 %v1073, %v1073
        %v1090 = vmul.f32 %v1074, %v1074
        %v1091 = vmul.f32 %v1075, %v1075
        %v1092 = vmul.f32 %v1076, %v1076
        %v1093 = vmul.f32 %v1077, %v1077
        %v1094 = vmul.f32 %v1078, %v1078
        %v1095 = vmul.f32 %v1079, %v1079
        %v1096 = vmul.f32 %v1080, %v1080
        %v1097 = vsel %vm485, %v1081, 0.0
        %1098 = vadd.xlane.f32.xlu0 %v1097
        %v1099 = vpop.xlane.xlu0 %1098
        %v1100 = vsel %vm485, %v1082, 0.0
        %1101 = vadd.xlane.f32.xlu0 %v1100
        %v1102 = vpop.xlane.xlu0 %1101
        %v1103 = vsel %vm485, %v1083, 0.0
        %1104 = vadd.xlane.f32.xlu0 %v1103
        %v1105 = vpop.xlane.xlu0 %1104
        %v1106 = vsel %vm485, %v1084, 0.0
        %1107 = vadd.xlane.f32.xlu0 %v1106
        %v1108 = vpop.xlane.xlu0 %1107
        %v1109 = vsel %vm485, %v1085, 0.0
        %1110 = vadd.xlane.f32.xlu0 %v1109
        %v1111 = vpop.xlane.xlu0 %1110
        %v1112 = vsel %vm485, %v1086, 0.0
        %1113 = vadd.xlane.f32.xlu0 %v1112
        %v1114 = vpop.xlane.xlu0 %1113
        %v1115 = vsel %vm485, %v1087, 0.0
        %1116 = vadd.xlane.f32.xlu0 %v1115
        %v1117 = vpop.xlane.xlu0 %1116
        %v1118 = vsel %vm485, %v1088, 0.0
        %1119 = vadd.xlane.f32.xlu0 %v1118
        %v1120 = vpop.xlane.xlu0 %1119
        %v1121 = vsel %vm485, %v1089, 0.0
        %1122 = vadd.xlane.f32.xlu0 %v1121
        %v1123 = vpop.xlane.xlu0 %1122
        %v1124 = vsel %vm485, %v1090, 0.0
        %1125 = vadd.xlane.f32.xlu0 %v1124
        %v1126 = vpop.xlane.xlu0 %1125
        %v1127 = vsel %vm485, %v1091, 0.0
        %1128 = vadd.xlane.f32.xlu0 %v1127
        %v1129 = vpop.xlane.xlu0 %1128
        %v1130 = vsel %vm485, %v1092, 0.0
        %1131 = vadd.xlane.f32.xlu0 %v1130
        %v1132 = vpop.xlane.xlu0 %1131
        %v1133 = vsel %vm485, %v1093, 0.0
        %1134 = vadd.xlane.f32.xlu0 %v1133
        %v1135 = vpop.xlane.xlu0 %1134
        %v1136 = vsel %vm485, %v1094, 0.0
        %1137 = vadd.xlane.f32.xlu0 %v1136
        %v1138 = vpop.xlane.xlu0 %1137
        %v1139 = vsel %vm485, %v1095, 0.0
        %1140 = vadd.xlane.f32.xlu0 %v1139
        %v1141 = vpop.xlane.xlu0 %1140
        %v1142 = vsel %vm485, %v1096, 0.0
        %1143 = vadd.xlane.f32.xlu0 %v1142
        %v1144 = vpop.xlane.xlu0 %1143
        %v1145 = vmul.f32 %v1099, %v1048
        %v1146 = vmul.f32 %v1102, %v1048
        %v1147 = vmul.f32 %v1105, %v1048
        %v1148 = vmul.f32 %v1108, %v1048
        %v1149 = vmul.f32 %v1111, %v1048
        %v1150 = vmul.f32 %v1114, %v1048
        %v1151 = vmul.f32 %v1117, %v1048
        %v1152 = vmul.f32 %v1120, %v1048
        %v1153 = vmul.f32 %v1123, %v1048
        %v1154 = vmul.f32 %v1126, %v1048
        %v1155 = vmul.f32 %v1129, %v1048
        %v1156 = vmul.f32 %v1132, %v1048
        %v1157 = vmul.f32 %v1135, %v1048
        %v1158 = vmul.f32 %v1138, %v1048
        %v1159 = vmul.f32 %v1141, %v1048
        %v1160 = vmul.f32 %v1144, %v1048
        %v1161 = vadd.f32 %v1145, 1e-05
        %v1162 = vadd.f32 %v1146, 1e-05
        %v1163 = vadd.f32 %v1147, 1e-05
        %v1164 = vadd.f32 %v1148, 1e-05
        %v1165 = vadd.f32 %v1149, 1e-05
        %v1166 = vadd.f32 %v1150, 1e-05
        %v1167 = vadd.f32 %v1151, 1e-05
        %v1168 = vadd.f32 %v1152, 1e-05
        %v1169 = vadd.f32 %v1153, 1e-05
        %v1170 = vadd.f32 %v1154, 1e-05
        %v1171 = vadd.f32 %v1155, 1e-05
        %v1172 = vadd.f32 %v1156, 1e-05
        %v1173 = vadd.f32 %v1157, 1e-05
        %v1174 = vadd.f32 %v1158, 1e-05
        %v1175 = vadd.f32 %v1159, 1e-05
        %v1176 = vadd.f32 %v1160, 1e-05
        %v1177 = vrsqrt.pop %v1161
        %v1178 = vrsqrt.pop %v1162
        %v1179 = vrsqrt.pop %v1163
        %v1180 = vrsqrt.pop %v1164
        %v1181 = vrsqrt.pop %v1165
        %v1182 = vrsqrt.pop %v1166
        %v1183 = vrsqrt.pop %v1167
        %v1184 = vrsqrt.pop %v1168
        %v1185 = vrsqrt.pop %v1169
        %v1186 = vrsqrt.pop %v1170
        %v1187 = vrsqrt.pop %v1171
        %v1188 = vrsqrt.pop %v1172
        %v1189 = vrsqrt.pop %v1173
        %v1190 = vrsqrt.pop %v1174
        %v1191 = vrsqrt.pop %v1175
        %v1192 = vrsqrt.pop %v1176
        %v1193 = vmul.f32 %v1065, %v1177
        %v1194 = vmul.f32 %v1066, %v1178
        %v1195 = vmul.f32 %v1067, %v1179
        %v1196 = vmul.f32 %v1068, %v1180
        %v1197 = vmul.f32 %v1069, %v1181
        %v1198 = vmul.f32 %v1070, %v1182
        %v1199 = vmul.f32 %v1071, %v1183
        %v1200 = vmul.f32 %v1072, %v1184
        %v1201 = vmul.f32 %v1073, %v1185
        %v1202 = vmul.f32 %v1074, %v1186
        %v1203 = vmul.f32 %v1075, %v1187
        %v1204 = vmul.f32 %v1076, %v1188
        %v1205 = vmul.f32 %v1077, %v1189
        %v1206 = vmul.f32 %v1078, %v1190
        %v1207 = vmul.f32 %v1079, %v1191
        %v1208 = vmul.f32 %v1080, %v1192
        %v1209 = vld [vmem:[%s4] sm:$0x1]
        %v1211 = vlaneseq
        %v1212 = vshrl.u32 %v1211, 7
        %v1213 = vsub.s32 0, %v1212
        %v1214 = vrot.slane %v1209, %v1213
        %v1216 = vmul.f32 %v1193, %v1214
        %v1217 = vmul.f32 %v1194, %v1214
        %v1218 = vmul.f32 %v1195, %v1214
        %v1219 = vmul.f32 %v1196, %v1214
        %v1220 = vmul.f32 %v1197, %v1214
        %v1221 = vmul.f32 %v1198, %v1214
        %v1222 = vmul.f32 %v1199, %v1214
        %v1223 = vmul.f32 %v1200, %v1214
        %v1224 = vmul.f32 %v1201, %v1214
        %v1225 = vmul.f32 %v1202, %v1214
        %v1226 = vmul.f32 %v1203, %v1214
        %v1227 = vmul.f32 %v1204, %v1214
        %v1228 = vmul.f32 %v1205, %v1214
        %v1229 = vmul.f32 %v1206, %v1214
        %v1230 = vmul.f32 %v1207, %v1214
        %v1231 = vmul.f32 %v1208, %v1214
        %v1232 = vld [vmem:[%s5] sm:$0x1]
        %v1234 = vlaneseq
        %v1235 = vshrl.u32 %v1234, 7
        %v1236 = vsub.s32 0, %v1235
        %v1237 = vrot.slane %v1232, %v1236
        %v1239 = vadd.f32 %v1216, %v1237
        %v1240 = vadd.f32 %v1217, %v1237
        %v1241 = vadd.f32 %v1218, %v1237
        %v1242 = vadd.f32 %v1219, %v1237
        %v1243 = vadd.f32 %v1220, %v1237
        %v1244 = vadd.f32 %v1221, %v1237
        %v1245 = vadd.f32 %v1222, %v1237
        %v1246 = vadd.f32 %v1223, %v1237
        %v1247 = vadd.f32 %v1224, %v1237
        %v1248 = vadd.f32 %v1225, %v1237
        %v1249 = vadd.f32 %v1226, %v1237
        %v1250 = vadd.f32 %v1227, %v1237
        %v1251 = vadd.f32 %v1228, %v1237
        %v1252 = vadd.f32 %v1229, %v1237
        %v1253 = vadd.f32 %v1230, %v1237
        %v1254 = vadd.f32 %v1231, %v1237
        %vm1255 = vcmp.lt.s32.totalorder %v429, 8
        %vm1256 = vcmp.lt.s32.totalorder %v430, 8
        %vm1257 = vcmp.lt.s32.totalorder %v431, 8
        %vm1258 = vcmp.lt.s32.totalorder %v432, 8
        %vm1259 = vcmp.lt.s32.totalorder %v433, 8
        %vm1260 = vcmp.lt.s32.totalorder %v434, 8
        %vm1261 = vcmp.lt.s32.totalorder %v435, 8
        %vm1262 = vcmp.lt.s32.totalorder %v436, 8
        %vm1263 = vcmp.lt.s32.totalorder %v437, 8
        %vm1264 = vcmp.lt.s32.totalorder %v438, 8
        %vm1265 = vcmp.lt.s32.totalorder %v439, 8
        %vm1266 = vcmp.lt.s32.totalorder %v440, 8
        %vm1267 = vcmp.lt.s32.totalorder %v441, 8
        %vm1268 = vcmp.lt.s32.totalorder %v442, 8
        %vm1269 = vcmp.lt.s32.totalorder %v443, 8
        %vm1270 = vcmp.lt.s32.totalorder %v444, 8
        %v1271 = vsel %vm1255, 1, 0
        %v1272 = vsel %vm1256, 1, 0
        %v1273 = vsel %vm1257, 1, 0
        %v1274 = vsel %vm1258, 1, 0
        %v1275 = vsel %vm1259, 1, 0
        %v1276 = vsel %vm1260, 1, 0
        %v1277 = vsel %vm1261, 1, 0
        %v1278 = vsel %vm1262, 1, 0
        %v1279 = vsel %vm1263, 1, 0
        %v1280 = vsel %vm1264, 1, 0
        %v1281 = vsel %vm1265, 1, 0
        %v1282 = vsel %vm1266, 1, 0
        %v1283 = vsel %vm1267, 1, 0
        %v1284 = vsel %vm1268, 1, 0
        %v1285 = vsel %vm1269, 1, 0
        %v1286 = vsel %vm1270, 1, 0
        %vm1287 = vcmp.eq.s32.totalorder %v1271, 1
        %vm1288 = vcmp.eq.s32.totalorder %v1272, 1
        %vm1289 = vcmp.eq.s32.totalorder %v1273, 1
        %vm1290 = vcmp.eq.s32.totalorder %v1274, 1
        %vm1291 = vcmp.eq.s32.totalorder %v1275, 1
        %vm1292 = vcmp.eq.s32.totalorder %v1276, 1
        %vm1293 = vcmp.eq.s32.totalorder %v1277, 1
        %vm1294 = vcmp.eq.s32.totalorder %v1278, 1
        %vm1295 = vcmp.eq.s32.totalorder %v1279, 1
        %vm1296 = vcmp.eq.s32.totalorder %v1280, 1
        %vm1297 = vcmp.eq.s32.totalorder %v1281, 1
        %vm1298 = vcmp.eq.s32.totalorder %v1282, 1
        %vm1299 = vcmp.eq.s32.totalorder %v1283, 1
        %vm1300 = vcmp.eq.s32.totalorder %v1284, 1
        %vm1301 = vcmp.eq.s32.totalorder %v1285, 1
        %vm1302 = vcmp.eq.s32.totalorder %v1286, 1
        %v1303 = vsel %vm1287, %v1239, 0.0
        %v1304 = vsel %vm1288, %v1240, 0.0
        %v1305 = vsel %vm1289, %v1241, 0.0
        %v1306 = vsel %vm1290, %v1242, 0.0
        %v1307 = vsel %vm1291, %v1243, 0.0
        %v1308 = vsel %vm1292, %v1244, 0.0
        %v1309 = vsel %vm1293, %v1245, 0.0
        %v1310 = vsel %vm1294, %v1246, 0.0
        %v1311 = vsel %vm1295, %v1247, 0.0
        %v1312 = vsel %vm1296, %v1248, 0.0
        %v1313 = vsel %vm1297, %v1249, 0.0
        %v1314 = vsel %vm1298, %v1250, 0.0
        %v1315 = vsel %vm1299, %v1251, 0.0
        %v1316 = vsel %vm1300, %v1252, 0.0
        %v1317 = vsel %vm1301, %v1253, 0.0
        %v1318 = vsel %vm1302, %v1254, 0.0
        %v1319 = vpack.c.bf16 %v1304, %v1303
        %v1320 = vpack.c.bf16 %v1306, %v1305
        %v1321 = vpack.c.bf16 %v1308, %v1307
        %v1322 = vpack.c.bf16 %v1310, %v1309
        %v1323 = vpack.c.bf16 %v1312, %v1311
        %v1324 = vpack.c.bf16 %v1314, %v1313
        %v1325 = vpack.c.bf16 %v1316, %v1315
        %v1326 = vpack.c.bf16 %v1318, %v1317
        %v1327 = vld [vmem:[%s6] sm:$0xf]
        %v1328 = vld [vmem:[%s6 + $0x4] sm:$0xf]
        %v1329 = vld [vmem:[%s6 + $0x8] sm:$0xf]
        %v1330 = vld [vmem:[%s6 + $0xc] sm:$0xf]
        %v1335 = vunpack.c.l.b16 %v1327
        %v1336 = vunpack.c.l.b16 %v1328
        %v1337 = vunpack.c.l.b16 %v1329
        %v1338 = vunpack.c.l.b16 %v1330
        %v1339 = vpack.c.b16 %v1336, %v1335
        %v1340 = vpack.c.b16 %v1338, %v1337
        %v1344 = vsel %vm485, %v1319, 0
        %v1347 = vsel %vm485, %v1320, 0
        %v1350 = vsel %vm485, %v1321, 0
        %v1353 = vsel %vm485, %v1322, 0
        %v1356 = vsel %vm485, %v1323, 0
        %v1359 = vsel %vm485, %v1324, 0
        %v1362 = vsel %vm485, %v1325, 0
        %v1365 = vsel %vm485, %v1326, 0
        %1367 = vmatprep.subr.bf16.mxu0 0
        %1368 = vmatpush1.bf16.msra.mxu0 0
        %1369 = vmatprep.subr.bf16.mxu0 0
        %1370 = vmatpush1.bf16.msra.mxu0 0
        %1371 = vmatprep.subr.bf16.mxu0 0
        %1372 = vmatpush1.bf16.msra.mxu0 0
        %1373 = vmatprep.subr.bf16.mxu0 0
        %1374 = vmatpush1.bf16.msra.mxu0 0
        %1375 = vmatprep.subr.bf16.mxu0 0
        %1376 = vmatpush1.bf16.msra.mxu0 0
        %1377 = vmatprep.subr.bf16.mxu0 0
        %1378 = vmatpush1.bf16.msra.mxu0 0
        %1379 = vmatprep.subr.bf16.mxu0 0
        %1380 = vmatpush1.bf16.msra.mxu0 %v1340
        %1381 = vmatprep.subr.bf16.mxu0 0
        %1382 = vmatpush1.bf16.msra.mxu0 %v1339
        %1383 = vmatprep.subr.bf16.mxu0 0
        %1384 = vmatpush2.bf16.msra.mxu0 0
        %1385 = vmatprep.subr.bf16.mxu0 0
        %1386 = vmatpush2.bf16.msra.mxu0 0
        %1387 = vmatprep.subr.bf16.mxu0 0
        %1388 = vmatpush2.bf16.msra.mxu0 0
        %1389 = vmatprep.subr.bf16.mxu0 0
        %1390 = vmatpush2.bf16.msra.mxu0 0
        %1391 = vmatprep.subr.bf16.mxu0 0
        %1392 = vmatpush2.bf16.msra.mxu0 0
        %1393 = vmatprep.subr.bf16.mxu0 0
        %1394 = vmatpush2.bf16.msra.mxu0 0
        %1395 = vmatprep.subr.bf16.mxu0 0
        %1396 = vmatpush2.bf16.msra.mxu0 0
        %1397 = vmatprep.subr.bf16.mxu0 0
        %1398 = vmatpush2.bf16.msra.mxu0 0
        %1399 = vmatprep.mubr.bf16.mxu0 0
        %1400 = vmatmul.mubr.bf16.gmra.mxu0 %v1344
        %v1401 = vpop.f32.mrf.mxu0
        %v1402 = vadd.f32 0.0, %v1401
        %v1403 = vpop.f32.mrf.mxu0
        %v1404 = vpop.f32.mrf.mxu0
        %v1405 = vadd.f32 0.0, %v1404
        %v1406 = vpop.f32.mrf.mxu0
        %1407 = vmatprep.mubr.bf16.mxu0 0
        %1408 = vmatmul.mubr.bf16.gmra.mxu0 %v1347
        %v1409 = vpop.f32.mrf.mxu0
        %v1410 = vadd.f32 0.0, %v1409
        %v1411 = vpop.f32.mrf.mxu0
        %v1412 = vpop.f32.mrf.mxu0
        %v1413 = vadd.f32 0.0, %v1412
        %v1414 = vpop.f32.mrf.mxu0
        %1415 = vmatprep.mubr.bf16.mxu0 0
        %1416 = vmatmul.mubr.bf16.gmra.mxu0 %v1350
        %v1417 = vpop.f32.mrf.mxu0
        %v1418 = vadd.f32 0.0, %v1417
        %v1419 = vpop.f32.mrf.mxu0
        %v1420 = vpop.f32.mrf.mxu0
        %v1421 = vadd.f32 0.0, %v1420
        %v1422 = vpop.f32.mrf.mxu0
        %1423 = vmatprep.mubr.bf16.mxu0 0
        %1424 = vmatmul.mubr.bf16.gmra.mxu0 %v1353
        %v1425 = vpop.f32.mrf.mxu0
        %v1426 = vadd.f32 0.0, %v1425
        %v1427 = vpop.f32.mrf.mxu0
        %v1428 = vpop.f32.mrf.mxu0
        %v1429 = vadd.f32 0.0, %v1428
        %v1430 = vpop.f32.mrf.mxu0
        %1431 = vmatprep.mubr.bf16.mxu0 0
        %1432 = vmatmul.mubr.bf16.gmra.mxu0 %v1356
        %v1433 = vpop.f32.mrf.mxu0
        %v1434 = vadd.f32 0.0, %v1433
        %v1435 = vpop.f32.mrf.mxu0
        %v1436 = vpop.f32.mrf.mxu0
        %v1437 = vadd.f32 0.0, %v1436
        %v1438 = vpop.f32.mrf.mxu0
        %1439 = vmatprep.mubr.bf16.mxu0 0
        %1440 = vmatmul.mubr.bf16.gmra.mxu0 %v1359
        %v1441 = vpop.f32.mrf.mxu0
        %v1442 = vadd.f32 0.0, %v1441
        %v1443 = vpop.f32.mrf.mxu0
        %v1444 = vpop.f32.mrf.mxu0
        %v1445 = vadd.f32 0.0, %v1444
        %v1446 = vpop.f32.mrf.mxu0
        %1447 = vmatprep.mubr.bf16.mxu0 0
        %1448 = vmatmul.mubr.bf16.gmra.mxu0 %v1362
        %v1449 = vpop.f32.mrf.mxu0
        %v1450 = vadd.f32 0.0, %v1449
        %v1451 = vpop.f32.mrf.mxu0
        %v1452 = vpop.f32.mrf.mxu0
        %v1453 = vadd.f32 0.0, %v1452
        %v1454 = vpop.f32.mrf.mxu0
        %1455 = vmatprep.mubr.bf16.mxu0 0
        %1456 = vmatmul.mubr.bf16.gmra.mxu0 %v1365
        %v1457 = vpop.f32.mrf.mxu0
        %v1458 = vadd.f32 0.0, %v1457
        %v1459 = vpop.f32.mrf.mxu0
        %v1460 = vpop.f32.mrf.mxu0
        %v1461 = vadd.f32 0.0, %v1460
        %v1462 = vpop.f32.mrf.mxu0
        %1463 = vdwg.mxu0
        %v1464 = vrot.slane %v1402, 7
        %v1465 = vrot.slane %v1405, 7
        %v1466 = vrot.slane %v1410, 7
        %v1467 = vrot.slane %v1413, 7
        %v1468 = vrot.slane %v1418, 7
        %v1469 = vrot.slane %v1421, 7
        %v1470 = vrot.slane %v1426, 7
        %v1471 = vrot.slane %v1429, 7
        %v1472 = vrot.slane %v1434, 7
        %v1473 = vrot.slane %v1437, 7
        %v1474 = vrot.slane %v1442, 7
        %v1475 = vrot.slane %v1445, 7
        %v1476 = vrot.slane %v1450, 7
        %v1477 = vrot.slane %v1453, 7
        %v1478 = vrot.slane %v1458, 7
        %v1479 = vrot.slane %v1461, 7
        %v1480 = vsel %vm623, %v1478, %v1479
        %v1481 = vsel %vm623, %v1477, %v1478
        %v1482 = vsel %vm623, %v1476, %v1477
        %v1483 = vsel %vm623, %v1475, %v1476
        %v1484 = vsel %vm623, %v1474, %v1475
        %v1485 = vsel %vm623, %v1473, %v1474
        %v1486 = vsel %vm623, %v1472, %v1473
        %v1487 = vsel %vm623, %v1471, %v1472
        %v1488 = vsel %vm623, %v1470, %v1471
        %v1489 = vsel %vm623, %v1469, %v1470
        %v1490 = vsel %vm623, %v1468, %v1469
        %v1491 = vsel %vm623, %v1467, %v1468
        %v1492 = vsel %vm623, %v1466, %v1467
        %v1493 = vsel %vm623, %v1465, %v1466
        %v1494 = vsel %vm623, %v1464, %v1465
        %v1495 = vsel %vm623, %v1479, %v1464
        %v1496 = vsel %vm672, %v1495, 0.0
        %v1497 = vsel %vm673, %v1494, 0.0
        %v1498 = vsel %vm674, %v1493, 0.0
        %v1499 = vsel %vm675, %v1492, 0.0
        %v1500 = vsel %vm676, %v1491, 0.0
        %v1501 = vsel %vm677, %v1490, 0.0
        %v1502 = vsel %vm678, %v1489, 0.0
        %v1503 = vsel %vm679, %v1488, 0.0
        %v1504 = vsel %vm680, %v1487, 0.0
        %v1505 = vsel %vm681, %v1486, 0.0
        %v1506 = vsel %vm682, %v1485, 0.0
        %v1507 = vsel %vm683, %v1484, 0.0
        %v1508 = vsel %vm684, %v1483, 0.0
        %v1509 = vsel %vm685, %v1482, 0.0
        %v1510 = vsel %vm686, %v1481, 0.0
        %v1511 = vsel %vm687, %v1480, 0.0
        %v1512 = vadd.f32 %v1496, 0.0
        %v1513 = vadd.f32 %v1497, 0.0
        %v1514 = vadd.f32 %v1498, 0.0
        %v1515 = vadd.f32 %v1499, 0.0
        %v1516 = vadd.f32 %v1500, 0.0
        %v1517 = vadd.f32 %v1501, 0.0
        %v1518 = vadd.f32 %v1502, 0.0
        %v1519 = vadd.f32 %v1503, 0.0
        %v1520 = vadd.f32 %v1504, 0.0
        %v1521 = vadd.f32 %v1505, 0.0
        %v1522 = vadd.f32 %v1506, 0.0
        %v1523 = vadd.f32 %v1507, 0.0
        %v1524 = vadd.f32 %v1508, 0.0
        %v1525 = vadd.f32 %v1509, 0.0
        %v1526 = vadd.f32 %v1510, 0.0
        %v1527 = vadd.f32 %v1511, 0.0
        %1544 = vrot.lane.b32.xlu0 %v1402, 96
        %v1545 = vpop.permute.xlu0 %1544
        %1546 = vrot.lane.b32.xlu0 %v1405, 96
        %v1547 = vpop.permute.xlu0 %1546
        %1548 = vrot.lane.b32.xlu0 %v1410, 96
        %v1549 = vpop.permute.xlu0 %1548
        %1550 = vrot.lane.b32.xlu0 %v1413, 96
        %v1551 = vpop.permute.xlu0 %1550
        %1552 = vrot.lane.b32.xlu0 %v1418, 96
        %v1553 = vpop.permute.xlu0 %1552
        %1554 = vrot.lane.b32.xlu0 %v1421, 96
        %v1555 = vpop.permute.xlu0 %1554
        %1556 = vrot.lane.b32.xlu0 %v1426, 96
        %v1557 = vpop.permute.xlu0 %1556
        %1558 = vrot.lane.b32.xlu0 %v1429, 96
        %v1559 = vpop.permute.xlu0 %1558
        %1560 = vrot.lane.b32.xlu0 %v1434, 96
        %v1561 = vpop.permute.xlu0 %1560
        %1562 = vrot.lane.b32.xlu0 %v1437, 96
        %v1563 = vpop.permute.xlu0 %1562
        %1564 = vrot.lane.b32.xlu0 %v1442, 96
        %v1565 = vpop.permute.xlu0 %1564
        %1566 = vrot.lane.b32.xlu0 %v1445, 96
        %v1567 = vpop.permute.xlu0 %1566
        %1568 = vrot.lane.b32.xlu0 %v1450, 96
        %v1569 = vpop.permute.xlu0 %1568
        %1570 = vrot.lane.b32.xlu0 %v1453, 96
        %v1571 = vpop.permute.xlu0 %1570
        %1572 = vrot.lane.b32.xlu0 %v1458, 96
        %v1573 = vpop.permute.xlu0 %1572
        %1574 = vrot.lane.b32.xlu0 %v1461, 96
        %v1575 = vpop.permute.xlu0 %1574
        %v1592 = vadd.f32 %v1512, %v1545
        %v1593 = vadd.f32 %v1513, %v1547
        %v1594 = vadd.f32 %v1514, %v1549
        %v1595 = vadd.f32 %v1515, %v1551
        %v1596 = vadd.f32 %v1516, %v1553
        %v1597 = vadd.f32 %v1517, %v1555
        %v1598 = vadd.f32 %v1518, %v1557
        %v1599 = vadd.f32 %v1519, %v1559
        %v1600 = vadd.f32 %v1520, %v1561
        %v1601 = vadd.f32 %v1521, %v1563
        %v1602 = vadd.f32 %v1522, %v1565
        %v1603 = vadd.f32 %v1523, %v1567
        %v1604 = vadd.f32 %v1524, %v1569
        %v1605 = vadd.f32 %v1525, %v1571
        %v1606 = vadd.f32 %v1526, %v1573
        %v1607 = vadd.f32 %v1527, %v1575
        %1608 = vrot.lane.b32.xlu0 %v1402, 64
        %v1609 = vpop.permute.xlu0 %1608
        %1610 = vrot.lane.b32.xlu0 %v1405, 64
        %v1611 = vpop.permute.xlu0 %1610
        %1612 = vrot.lane.b32.xlu0 %v1410, 64
        %v1613 = vpop.permute.xlu0 %1612
        %1614 = vrot.lane.b32.xlu0 %v1413, 64
        %v1615 = vpop.permute.xlu0 %1614
        %1616 = vrot.lane.b32.xlu0 %v1418, 64
        %v1617 = vpop.permute.xlu0 %1616
        %1618 = vrot.lane.b32.xlu0 %v1421, 64
        %v1619 = vpop.permute.xlu0 %1618
        %1620 = vrot.lane.b32.xlu0 %v1426, 64
        %v1621 = vpop.permute.xlu0 %1620
        %1622 = vrot.lane.b32.xlu0 %v1429, 64
        %v1623 = vpop.permute.xlu0 %1622
        %1624 = vrot.lane.b32.xlu0 %v1434, 64
        %v1625 = vpop.permute.xlu0 %1624
        %1626 = vrot.lane.b32.xlu0 %v1437, 64
        %v1627 = vpop.permute.xlu0 %1626
        %1628 = vrot.lane.b32.xlu0 %v1442, 64
        %v1629 = vpop.permute.xlu0 %1628
        %1630 = vrot.lane.b32.xlu0 %v1445, 64
        %v1631 = vpop.permute.xlu0 %1630
        %1632 = vrot.lane.b32.xlu0 %v1450, 64
        %v1633 = vpop.permute.xlu0 %1632
        %1634 = vrot.lane.b32.xlu0 %v1453, 64
        %v1635 = vpop.permute.xlu0 %1634
        %1636 = vrot.lane.b32.xlu0 %v1458, 64
        %v1637 = vpop.permute.xlu0 %1636
        %1638 = vrot.lane.b32.xlu0 %v1461, 64
        %v1639 = vpop.permute.xlu0 %1638
        %v1656 = vrot.slane %v1609, 1
        %v1657 = vrot.slane %v1611, 1
        %v1658 = vrot.slane %v1613, 1
        %v1659 = vrot.slane %v1615, 1
        %v1660 = vrot.slane %v1617, 1
        %v1661 = vrot.slane %v1619, 1
        %v1662 = vrot.slane %v1621, 1
        %v1663 = vrot.slane %v1623, 1
        %v1664 = vrot.slane %v1625, 1
        %v1665 = vrot.slane %v1627, 1
        %v1666 = vrot.slane %v1629, 1
        %v1667 = vrot.slane %v1631, 1
        %v1668 = vrot.slane %v1633, 1
        %v1669 = vrot.slane %v1635, 1
        %v1670 = vrot.slane %v1637, 1
        %v1671 = vrot.slane %v1639, 1
        %v1672 = vsel %vm864, %v1670, %v1671
        %v1673 = vsel %vm864, %v1669, %v1670
        %v1674 = vsel %vm864, %v1668, %v1669
        %v1675 = vsel %vm864, %v1667, %v1668
        %v1676 = vsel %vm864, %v1666, %v1667
        %v1677 = vsel %vm864, %v1665, %v1666
        %v1678 = vsel %vm864, %v1664, %v1665
        %v1679 = vsel %vm864, %v1663, %v1664
        %v1680 = vsel %vm864, %v1662, %v1663
        %v1681 = vsel %vm864, %v1661, %v1662
        %v1682 = vsel %vm864, %v1660, %v1661
        %v1683 = vsel %vm864, %v1659, %v1660
        %v1684 = vsel %vm864, %v1658, %v1659
        %v1685 = vsel %vm864, %v1657, %v1658
        %v1686 = vsel %vm864, %v1656, %v1657
        %v1687 = vsel %vm864, %v1671, %v1656
        %v1688 = vsel %vm913, %v1686, 0.0
        %v1689 = vsel %vm914, %v1685, 0.0
        %v1690 = vsel %vm915, %v1684, 0.0
        %v1691 = vsel %vm916, %v1683, 0.0
        %v1692 = vsel %vm917, %v1682, 0.0
        %v1693 = vsel %vm918, %v1681, 0.0
        %v1694 = vsel %vm919, %v1680, 0.0
        %v1695 = vsel %vm920, %v1679, 0.0
        %v1696 = vsel %vm921, %v1678, 0.0
        %v1697 = vsel %vm922, %v1677, 0.0
        %v1698 = vsel %vm923, %v1676, 0.0
        %v1699 = vsel %vm924, %v1675, 0.0
        %v1700 = vsel %vm925, %v1674, 0.0
        %v1701 = vsel %vm926, %v1673, 0.0
        %v1702 = vsel %vm927, %v1672, 0.0
        %v1703 = vsel %vm928, %v1687, 0.0
        %v1704 = vadd.f32 %v1592, %v1688
        %v1705 = vadd.f32 %v1593, %v1689
        %v1706 = vadd.f32 %v1594, %v1690
        %v1707 = vadd.f32 %v1595, %v1691
        %v1708 = vadd.f32 %v1596, %v1692
        %v1709 = vadd.f32 %v1597, %v1693
        %v1710 = vadd.f32 %v1598, %v1694
        %v1711 = vadd.f32 %v1599, %v1695
        %v1712 = vadd.f32 %v1600, %v1696
        %v1713 = vadd.f32 %v1601, %v1697
        %v1714 = vadd.f32 %v1602, %v1698
        %v1715 = vadd.f32 %v1603, %v1699
        %v1716 = vadd.f32 %v1604, %v1700
        %v1717 = vadd.f32 %v1605, %v1701
        %v1718 = vadd.f32 %v1606, %v1702
        %v1719 = vadd.f32 %v1607, %v1703
        %v1720 = vld [vmem:[%s7] sm:$0x1]
        %v1722 = vlaneseq
        %v1723 = vshrl.u32 %v1722, 7
        %v1724 = vsub.s32 0, %v1723
        %v1725 = vrot.slane %v1720, %v1724
        %v1727 = vadd.f32 %v1704, %v1725
        %v1728 = vadd.f32 %v1705, %v1725
        %v1729 = vadd.f32 %v1706, %v1725
        %v1730 = vadd.f32 %v1707, %v1725
        %v1731 = vadd.f32 %v1708, %v1725
        %v1732 = vadd.f32 %v1709, %v1725
        %v1733 = vadd.f32 %v1710, %v1725
        %v1734 = vadd.f32 %v1711, %v1725
        %v1735 = vadd.f32 %v1712, %v1725
        %v1736 = vadd.f32 %v1713, %v1725
        %v1737 = vadd.f32 %v1714, %v1725
        %v1738 = vadd.f32 %v1715, %v1725
        %v1739 = vadd.f32 %v1716, %v1725
        %v1740 = vadd.f32 %v1717, %v1725
        %v1741 = vadd.f32 %v1718, %v1725
        %v1742 = vadd.f32 %v1719, %v1725
        %v1743 = vmax.f32 %v1727, 0.0
        %v1744 = vmax.f32 %v1728, 0.0
        %v1745 = vmax.f32 %v1729, 0.0
        %v1746 = vmax.f32 %v1730, 0.0
        %v1747 = vmax.f32 %v1731, 0.0
        %v1748 = vmax.f32 %v1732, 0.0
        %v1749 = vmax.f32 %v1733, 0.0
        %v1750 = vmax.f32 %v1734, 0.0
        %v1751 = vmax.f32 %v1735, 0.0
        %v1752 = vmax.f32 %v1736, 0.0
        %v1753 = vmax.f32 %v1737, 0.0
        %v1754 = vmax.f32 %v1738, 0.0
        %v1755 = vmax.f32 %v1739, 0.0
        %v1756 = vmax.f32 %v1740, 0.0
        %v1757 = vmax.f32 %v1741, 0.0
        %v1758 = vmax.f32 %v1742, 0.0
        %v1759 = vsel %vm485, %v1743, 0.0
        %1760 = vadd.xlane.f32.xlu0 %v1759
        %v1761 = vpop.xlane.xlu0 %1760
        %v1762 = vsel %vm485, %v1744, 0.0
        %1763 = vadd.xlane.f32.xlu0 %v1762
        %v1764 = vpop.xlane.xlu0 %1763
        %v1765 = vsel %vm485, %v1745, 0.0
        %1766 = vadd.xlane.f32.xlu0 %v1765
        %v1767 = vpop.xlane.xlu0 %1766
        %v1768 = vsel %vm485, %v1746, 0.0
        %1769 = vadd.xlane.f32.xlu0 %v1768
        %v1770 = vpop.xlane.xlu0 %1769
        %v1771 = vsel %vm485, %v1747, 0.0
        %1772 = vadd.xlane.f32.xlu0 %v1771
        %v1773 = vpop.xlane.xlu0 %1772
        %v1774 = vsel %vm485, %v1748, 0.0
        %1775 = vadd.xlane.f32.xlu0 %v1774
        %v1776 = vpop.xlane.xlu0 %1775
        %v1777 = vsel %vm485, %v1749, 0.0
        %1778 = vadd.xlane.f32.xlu0 %v1777
        %v1779 = vpop.xlane.xlu0 %1778
        %v1780 = vsel %vm485, %v1750, 0.0
        %1781 = vadd.xlane.f32.xlu0 %v1780
        %v1782 = vpop.xlane.xlu0 %1781
        %v1783 = vsel %vm485, %v1751, 0.0
        %1784 = vadd.xlane.f32.xlu0 %v1783
        %v1785 = vpop.xlane.xlu0 %1784
        %v1786 = vsel %vm485, %v1752, 0.0
        %1787 = vadd.xlane.f32.xlu0 %v1786
        %v1788 = vpop.xlane.xlu0 %1787
        %v1789 = vsel %vm485, %v1753, 0.0
        %1790 = vadd.xlane.f32.xlu0 %v1789
        %v1791 = vpop.xlane.xlu0 %1790
        %v1792 = vsel %vm485, %v1754, 0.0
        %1793 = vadd.xlane.f32.xlu0 %v1792
        %v1794 = vpop.xlane.xlu0 %1793
        %v1795 = vsel %vm485, %v1755, 0.0
        %1796 = vadd.xlane.f32.xlu0 %v1795
        %v1797 = vpop.xlane.xlu0 %1796
        %v1798 = vsel %vm485, %v1756, 0.0
        %1799 = vadd.xlane.f32.xlu0 %v1798
        %v1800 = vpop.xlane.xlu0 %1799
        %v1801 = vsel %vm485, %v1757, 0.0
        %1802 = vadd.xlane.f32.xlu0 %v1801
        %v1803 = vpop.xlane.xlu0 %1802
        %v1804 = vsel %vm485, %v1758, 0.0
        %1805 = vadd.xlane.f32.xlu0 %v1804
        %v1806 = vpop.xlane.xlu0 %1805
        %v1807 = vmul.f32 %v1761, %v1048
        %v1808 = vmul.f32 %v1764, %v1048
        %v1809 = vmul.f32 %v1767, %v1048
        %v1810 = vmul.f32 %v1770, %v1048
        %v1811 = vmul.f32 %v1773, %v1048
        %v1812 = vmul.f32 %v1776, %v1048
        %v1813 = vmul.f32 %v1779, %v1048
        %v1814 = vmul.f32 %v1782, %v1048
        %v1815 = vmul.f32 %v1785, %v1048
        %v1816 = vmul.f32 %v1788, %v1048
        %v1817 = vmul.f32 %v1791, %v1048
        %v1818 = vmul.f32 %v1794, %v1048
        %v1819 = vmul.f32 %v1797, %v1048
        %v1820 = vmul.f32 %v1800, %v1048
        %v1821 = vmul.f32 %v1803, %v1048
        %v1822 = vmul.f32 %v1806, %v1048
        %v1823 = vsub.f32 %v1743, %v1807
        %v1824 = vsub.f32 %v1744, %v1808
        %v1825 = vsub.f32 %v1745, %v1809
        %v1826 = vsub.f32 %v1746, %v1810
        %v1827 = vsub.f32 %v1747, %v1811
        %v1828 = vsub.f32 %v1748, %v1812
        %v1829 = vsub.f32 %v1749, %v1813
        %v1830 = vsub.f32 %v1750, %v1814
        %v1831 = vsub.f32 %v1751, %v1815
        %v1832 = vsub.f32 %v1752, %v1816
        %v1833 = vsub.f32 %v1753, %v1817
        %v1834 = vsub.f32 %v1754, %v1818
        %v1835 = vsub.f32 %v1755, %v1819
        %v1836 = vsub.f32 %v1756, %v1820
        %v1837 = vsub.f32 %v1757, %v1821
        %v1838 = vsub.f32 %v1758, %v1822
        %v1839 = vmul.f32 %v1823, %v1823
        %v1840 = vmul.f32 %v1824, %v1824
        %v1841 = vmul.f32 %v1825, %v1825
        %v1842 = vmul.f32 %v1826, %v1826
        %v1843 = vmul.f32 %v1827, %v1827
        %v1844 = vmul.f32 %v1828, %v1828
        %v1845 = vmul.f32 %v1829, %v1829
        %v1846 = vmul.f32 %v1830, %v1830
        %v1847 = vmul.f32 %v1831, %v1831
        %v1848 = vmul.f32 %v1832, %v1832
        %v1849 = vmul.f32 %v1833, %v1833
        %v1850 = vmul.f32 %v1834, %v1834
        %v1851 = vmul.f32 %v1835, %v1835
        %v1852 = vmul.f32 %v1836, %v1836
        %v1853 = vmul.f32 %v1837, %v1837
        %v1854 = vmul.f32 %v1838, %v1838
        %v1855 = vsel %vm485, %v1839, 0.0
        %1856 = vadd.xlane.f32.xlu0 %v1855
        %v1857 = vpop.xlane.xlu0 %1856
        %v1858 = vsel %vm485, %v1840, 0.0
        %1859 = vadd.xlane.f32.xlu0 %v1858
        %v1860 = vpop.xlane.xlu0 %1859
        %v1861 = vsel %vm485, %v1841, 0.0
        %1862 = vadd.xlane.f32.xlu0 %v1861
        %v1863 = vpop.xlane.xlu0 %1862
        %v1864 = vsel %vm485, %v1842, 0.0
        %1865 = vadd.xlane.f32.xlu0 %v1864
        %v1866 = vpop.xlane.xlu0 %1865
        %v1867 = vsel %vm485, %v1843, 0.0
        %1868 = vadd.xlane.f32.xlu0 %v1867
        %v1869 = vpop.xlane.xlu0 %1868
        %v1870 = vsel %vm485, %v1844, 0.0
        %1871 = vadd.xlane.f32.xlu0 %v1870
        %v1872 = vpop.xlane.xlu0 %1871
        %v1873 = vsel %vm485, %v1845, 0.0
        %1874 = vadd.xlane.f32.xlu0 %v1873
        %v1875 = vpop.xlane.xlu0 %1874
        %v1876 = vsel %vm485, %v1846, 0.0
        %1877 = vadd.xlane.f32.xlu0 %v1876
        %v1878 = vpop.xlane.xlu0 %1877
        %v1879 = vsel %vm485, %v1847, 0.0
        %1880 = vadd.xlane.f32.xlu0 %v1879
        %v1881 = vpop.xlane.xlu0 %1880
        %v1882 = vsel %vm485, %v1848, 0.0
        %1883 = vadd.xlane.f32.xlu0 %v1882
        %v1884 = vpop.xlane.xlu0 %1883
        %v1885 = vsel %vm485, %v1849, 0.0
        %1886 = vadd.xlane.f32.xlu0 %v1885
        %v1887 = vpop.xlane.xlu0 %1886
        %v1888 = vsel %vm485, %v1850, 0.0
        %1889 = vadd.xlane.f32.xlu0 %v1888
        %v1890 = vpop.xlane.xlu0 %1889
        %v1891 = vsel %vm485, %v1851, 0.0
        %1892 = vadd.xlane.f32.xlu0 %v1891
        %v1893 = vpop.xlane.xlu0 %1892
        %v1894 = vsel %vm485, %v1852, 0.0
        %1895 = vadd.xlane.f32.xlu0 %v1894
        %v1896 = vpop.xlane.xlu0 %1895
        %v1897 = vsel %vm485, %v1853, 0.0
        %1898 = vadd.xlane.f32.xlu0 %v1897
        %v1899 = vpop.xlane.xlu0 %1898
        %v1900 = vsel %vm485, %v1854, 0.0
        %1901 = vadd.xlane.f32.xlu0 %v1900
        %v1902 = vpop.xlane.xlu0 %1901
        %v1903 = vmul.f32 %v1857, %v1048
        %v1904 = vmul.f32 %v1860, %v1048
        %v1905 = vmul.f32 %v1863, %v1048
        %v1906 = vmul.f32 %v1866, %v1048
        %v1907 = vmul.f32 %v1869, %v1048
        %v1908 = vmul.f32 %v1872, %v1048
        %v1909 = vmul.f32 %v1875, %v1048
        %v1910 = vmul.f32 %v1878, %v1048
        %v1911 = vmul.f32 %v1881, %v1048
        %v1912 = vmul.f32 %v1884, %v1048
        %v1913 = vmul.f32 %v1887, %v1048
        %v1914 = vmul.f32 %v1890, %v1048
        %v1915 = vmul.f32 %v1893, %v1048
        %v1916 = vmul.f32 %v1896, %v1048
        %v1917 = vmul.f32 %v1899, %v1048
        %v1918 = vmul.f32 %v1902, %v1048
        %v1919 = vadd.f32 %v1903, 1e-05
        %v1920 = vadd.f32 %v1904, 1e-05
        %v1921 = vadd.f32 %v1905, 1e-05
        %v1922 = vadd.f32 %v1906, 1e-05
        %v1923 = vadd.f32 %v1907, 1e-05
        %v1924 = vadd.f32 %v1908, 1e-05
        %v1925 = vadd.f32 %v1909, 1e-05
        %v1926 = vadd.f32 %v1910, 1e-05
        %v1927 = vadd.f32 %v1911, 1e-05
        %v1928 = vadd.f32 %v1912, 1e-05
        %v1929 = vadd.f32 %v1913, 1e-05
        %v1930 = vadd.f32 %v1914, 1e-05
        %v1931 = vadd.f32 %v1915, 1e-05
        %v1932 = vadd.f32 %v1916, 1e-05
        %v1933 = vadd.f32 %v1917, 1e-05
        %v1934 = vadd.f32 %v1918, 1e-05
        %v1935 = vrsqrt.pop %v1919
        %v1936 = vrsqrt.pop %v1920
        %v1937 = vrsqrt.pop %v1921
        %v1938 = vrsqrt.pop %v1922
        %v1939 = vrsqrt.pop %v1923
        %v1940 = vrsqrt.pop %v1924
        %v1941 = vrsqrt.pop %v1925
        %v1942 = vrsqrt.pop %v1926
        %v1943 = vrsqrt.pop %v1927
        %v1944 = vrsqrt.pop %v1928
        %v1945 = vrsqrt.pop %v1929
        %v1946 = vrsqrt.pop %v1930
        %v1947 = vrsqrt.pop %v1931
        %v1948 = vrsqrt.pop %v1932
        %v1949 = vrsqrt.pop %v1933
        %v1950 = vrsqrt.pop %v1934
        %v1951 = vmul.f32 %v1823, %v1935
        %v1952 = vmul.f32 %v1824, %v1936
        %v1953 = vmul.f32 %v1825, %v1937
        %v1954 = vmul.f32 %v1826, %v1938
        %v1955 = vmul.f32 %v1827, %v1939
        %v1956 = vmul.f32 %v1828, %v1940
        %v1957 = vmul.f32 %v1829, %v1941
        %v1958 = vmul.f32 %v1830, %v1942
        %v1959 = vmul.f32 %v1831, %v1943
        %v1960 = vmul.f32 %v1832, %v1944
        %v1961 = vmul.f32 %v1833, %v1945
        %v1962 = vmul.f32 %v1834, %v1946
        %v1963 = vmul.f32 %v1835, %v1947
        %v1964 = vmul.f32 %v1836, %v1948
        %v1965 = vmul.f32 %v1837, %v1949
        %v1966 = vmul.f32 %v1838, %v1950
        %v1967 = vld [vmem:[%s8] sm:$0x1]
        %v1969 = vlaneseq
        %v1970 = vshrl.u32 %v1969, 7
        %v1971 = vsub.s32 0, %v1970
        %v1972 = vrot.slane %v1967, %v1971
        %v1974 = vmul.f32 %v1951, %v1972
        %v1975 = vmul.f32 %v1952, %v1972
        %v1976 = vmul.f32 %v1953, %v1972
        %v1977 = vmul.f32 %v1954, %v1972
        %v1978 = vmul.f32 %v1955, %v1972
        %v1979 = vmul.f32 %v1956, %v1972
        %v1980 = vmul.f32 %v1957, %v1972
        %v1981 = vmul.f32 %v1958, %v1972
        %v1982 = vmul.f32 %v1959, %v1972
        %v1983 = vmul.f32 %v1960, %v1972
        %v1984 = vmul.f32 %v1961, %v1972
        %v1985 = vmul.f32 %v1962, %v1972
        %v1986 = vmul.f32 %v1963, %v1972
        %v1987 = vmul.f32 %v1964, %v1972
        %v1988 = vmul.f32 %v1965, %v1972
        %v1989 = vmul.f32 %v1966, %v1972
        %v1990 = vld [vmem:[%s9] sm:$0x1]
        %v1992 = vlaneseq
        %v1993 = vshrl.u32 %v1992, 7
        %v1994 = vsub.s32 0, %v1993
        %v1995 = vrot.slane %v1990, %v1994
        %v1997 = vadd.f32 %v1974, %v1995
        %v1998 = vadd.f32 %v1975, %v1995
        %v1999 = vadd.f32 %v1976, %v1995
        %v2000 = vadd.f32 %v1977, %v1995
        %v2001 = vadd.f32 %v1978, %v1995
        %v2002 = vadd.f32 %v1979, %v1995
        %v2003 = vadd.f32 %v1980, %v1995
        %v2004 = vadd.f32 %v1981, %v1995
        %v2005 = vadd.f32 %v1982, %v1995
        %v2006 = vadd.f32 %v1983, %v1995
        %v2007 = vadd.f32 %v1984, %v1995
        %v2008 = vadd.f32 %v1985, %v1995
        %v2009 = vadd.f32 %v1986, %v1995
        %v2010 = vadd.f32 %v1987, %v1995
        %v2011 = vadd.f32 %v1988, %v1995
        %v2012 = vadd.f32 %v1989, %v1995
        %v2013 = vld [vmem:[%s10] sm:$0x1]
        %v2014 = vpack.c.bf16 %v1998, %v1997
        %v2015 = vpack.c.bf16 %v2000, %v1999
        %v2016 = vpack.c.bf16 %v2002, %v2001
        %v2017 = vpack.c.bf16 %v2004, %v2003
        %v2018 = vpack.c.bf16 %v2006, %v2005
        %v2019 = vpack.c.bf16 %v2008, %v2007
        %v2020 = vpack.c.bf16 %v2010, %v2009
        %v2021 = vpack.c.bf16 %v2012, %v2011
        %v2022 = vld [vmem:[#allocation2] sm:$0x1]
        %2024 = vset.pattern.permute.xlu0 0
        %2025 = vperm.xlu0 %2024, %v2022
        %v2026 = vpop.permute.xlu0 %2025
        %v2028 = vlaneseq
        %v2029 = vshrl.u32 %v2028, 7
        %v2030 = vsub.s32 0, %v2029
        %v2031 = vrot.slane %v2026, %v2030
        %v2033 = vsel %vm485, %v2013, 0
        %v2036 = vsel %vm485, %v2014, 0
        %v2039 = vsel %vm485, %v2015, 0
        %v2042 = vsel %vm485, %v2016, 0
        %v2045 = vsel %vm485, %v2017, 0
        %v2048 = vsel %vm485, %v2018, 0
        %v2051 = vsel %vm485, %v2019, 0
        %v2054 = vsel %vm485, %v2020, 0
        %v2057 = vsel %vm485, %v2021, 0
        %2059 = vmatprep.subr.bf16.mxu0 0
        %2060 = vmatpush1.bf16.xpose.msra.mxu0 %v2057
        %2061 = vmatprep.subr.bf16.mxu0 0
        %2062 = vmatpush1.bf16.xpose.msra.mxu0 %v2054
        %2063 = vmatprep.subr.bf16.mxu0 0
        %2064 = vmatpush1.bf16.xpose.msra.mxu0 %v2051
        %2065 = vmatprep.subr.bf16.mxu0 0
        %2066 = vmatpush1.bf16.xpose.msra.mxu0 %v2048
        %2067 = vmatprep.subr.bf16.mxu0 0
        %2068 = vmatpush1.bf16.xpose.msra.mxu0 %v2045
        %2069 = vmatprep.subr.bf16.mxu0 0
        %2070 = vmatpush1.bf16.xpose.msra.mxu0 %v2042
        %2071 = vmatprep.subr.bf16.mxu0 0
        %2072 = vmatpush1.bf16.xpose.msra.mxu0 %v2039
        %2073 = vmatprep.subr.bf16.mxu0 0
        %2074 = vmatpush1.bf16.xpose.msra.mxu0 %v2036
        %2075 = vmatprep.subr.bf16.mxu0 0
        %2076 = vmatpush2.bf16.xpose.msra.mxu0 0
        %2077 = vmatprep.subr.bf16.mxu0 0
        %2078 = vmatpush2.bf16.xpose.msra.mxu0 0
        %2079 = vmatprep.subr.bf16.mxu0 0
        %2080 = vmatpush2.bf16.xpose.msra.mxu0 0
        %2081 = vmatprep.subr.bf16.mxu0 0
        %2082 = vmatpush2.bf16.xpose.msra.mxu0 0
        %2083 = vmatprep.subr.bf16.mxu0 0
        %2084 = vmatpush2.bf16.xpose.msra.mxu0 0
        %2085 = vmatprep.subr.bf16.mxu0 0
        %2086 = vmatpush2.bf16.xpose.msra.mxu0 0
        %2087 = vmatprep.subr.bf16.mxu0 0
        %2088 = vmatpush2.bf16.xpose.msra.mxu0 0
        %2089 = vmatprep.subr.bf16.mxu0 0
        %2090 = vmatpush2.bf16.xpose.msra.mxu0 0
        %2091 = vmatprep.mubr.bf16.mxu0 0
        %2092 = vmatmul.mubr.bf16.gmra.mxu0 %v2033
        %v2093 = vpop.f32.mrf.mxu0
        %v2094 = vadd.f32 %v2031, %v2093
        %v2095 = vpop.f32.mrf.mxu0
        %v2096 = vpop.f32.mrf.mxu0
        %v2097 = vpop.f32.mrf.mxu0
        %2098 = vdwg.mxu0
        %v2099 = vld [vmem:[%s426] sm:$0x1]
        %vm2100 = vcmp.gt.f32.partialorder %v2099, 0.0
        %v2101 = vsel %vm2100, 0.0, %v2094
        %2102 = vst [vmem:[%s418] sm:$0x1] %v2101
        %s2103 = sand.u32 %s298, 1
        %s2104 = scalar_lea.sflag [#allocation4], %s2103
        %s2105 = sand.u32 %s298, 1
        %s2106 = scalar_lea.vmem [#allocation3], %s2105
        // Predicated region
        $region69: #{tpu_custom_call.1} parent=67 // pred_check
          %p2107 = pneg %p308
        $region70: #{tpu_custom_call.1} parent=67 // pred_check_branch
          %2109 = sbr.rel (%p2107) target = $region72
        $region71: #{tpu_custom_call.1} parent=67 // pred_region
          %s2111 = ssub.s32 16, 16
          %2112 = vsyncadd %s2104, %s2111
          %s2113 = smul.addr %s28, 16
          %s2114 = scalar_lea.hbm %s12, %s2113
          %s2116 = sshll.u32 %s2106, 4
          %s2117 = int_to_ptr.vmem [resolvable:$true] %s2116
          %2119 = dma.vmem_to_hbm [thread:$0]  %s2117, 16, %s2114, %s2104
        $region72: #{tpu_custom_call.1} parent=67 // pred_fallthru
          _
      $region68: #{tpu_custom_call.1} parent=5 // pred_fallthru
        _
      %p2120 = scmp.le.s32.totalorder 2, %s23
      // Predicated region
      $region73: #{tpu_custom_call.1} parent=5 // pred_check
        %p2121 = pneg %p2120
      $region74: #{tpu_custom_call.1} parent=5 // pred_check_branch
        %2123 = sbr.rel (%p2121) target = $region76
      $region75: #{tpu_custom_call.1} parent=5 // pred_region
        %s2124 = ssub.s32 %s23, 2
        // Predicated region
        $region77: #{tpu_custom_call.1} parent=75 // pred_check
          %p2125 = pneg %p314
        $region78: #{tpu_custom_call.1} parent=75 // pred_check_branch
          %2127 = sbr.rel (%p2125) target = $region80
        $region79: #{tpu_custom_call.1} parent=75 // pred_region
          %s2128 = sand.u32 %s299, 1
          %s2129 = scalar_lea.sflag [#allocation4], %s2128
          %s2130 = sand.u32 %s299, 1
          %s2131 = scalar_lea.vmem [#allocation3], %s2130
          %2132 = dma.done %s2129, 16
        $region80: #{tpu_custom_call.1} parent=75 // pred_fallthru
          _
      $region76: #{tpu_custom_call.1} parent=5 // pred_fallthru
        _
    $region6: #{tpu_custom_call.1} parent=1 // loop_footer
      %s27 = sadd.s32 1, %s23
    $region7: #{tpu_custom_call.1} parent=1 // loop_footer_branch
      %22 = sbr.rel target = $region3
    $region8: #{tpu_custom_call.1} parent=1 // loop_exit
      _
    %2133 = vsyncpa [#allocation4], 1
    %s2134 = scalar_lea.sflag [#allocation4], 1
    %2135 = vsyncpa %s2134, 1

</llo_original>
